<compile_context>
chip_gen: v7x
topology: tpu7x:2x2x1
jax: 0.10.0
libtpu: 0.0.40
codegen_flags: <defaults>
</compile_context>

<pallas_src>
import functools

import jax
import jax.numpy as jnp
from jax.experimental import pallas as pl
from jax.experimental.pallas import tpu as pltpu


def _tst_encoder_layer_kernel(
    src_ref,
    wq_ref, bq_ref, wk_ref, bk_ref, wv_ref, bv_ref, wo_ref, bo_ref,
    w1_ref, b1_ref, w2_ref, b2_ref,
    g1_ref, be1_ref, rm1_ref, rv1_ref,
    g2_ref, be2_ref, rm2_ref, rv2_ref,
    out_ref,
    *, n_heads, d_k, d_v, scale, eps):
    x0 = src_ref[0].astype(jnp.float32)            # [L, D]

    def linear_t(x, w_ref, b_ref):
        # y = x @ W^T + b with W in PyTorch (out, in) layout:
        # contract x dim 1 with W dim 1 (MXU takes the transposed RHS natively).
        y = jax.lax.dot_general(
            x, w_ref[...],
            dimension_numbers=(((1,), (1,)), ((), ())),
            preferred_element_type=jnp.float32)
        return y + b_ref[...]

    q = linear_t(x0, wq_ref, bq_ref)               # [L, H*dk]
    k = linear_t(x0, wk_ref, bk_ref)               # [L, H*dk]
    v = linear_t(x0, wv_ref, bv_ref)               # [L, H*dv]

    # Attention + output projection, accumulated head-by-head (static unroll):
    # concat(head_outs) @ W_O^T == sum_h head_out_h @ W_O[:, h*dv:(h+1)*dv]^T
    attn_proj = bo_ref[...]                        # (1, D); broadcasts over rows
    for h in range(n_heads):
        qh = q[:, h * d_k:(h + 1) * d_k]
        kh = k[:, h * d_k:(h + 1) * d_k]
        vh = v[:, h * d_v:(h + 1) * d_v]
        scores = jax.lax.dot_general(
            qh, kh, dimension_numbers=(((1,), (1,)), ((), ())),
            preferred_element_type=jnp.float32) * scale          # [L, L]
        scores = scores - jnp.max(scores, axis=-1, keepdims=True)
        e = jnp.exp(scores)
        attn = e / jnp.sum(e, axis=-1, keepdims=True)
        head_out = jnp.dot(attn, vh, preferred_element_type=jnp.float32)   # [L, dv]
        wo_h = wo_ref[:, h * d_v:(h + 1) * d_v]                            # [D, dv]
        attn_proj = attn_proj + jax.lax.dot_general(
            head_out, wo_h, dimension_numbers=(((1,), (1,)), ((), ())),
            preferred_element_type=jnp.float32)

    # residual + BatchNorm1d (inference: running stats -> per-channel affine)
    x1 = x0 + attn_proj
    x1 = (x1 - rm1_ref[...]) * (jax.lax.rsqrt(rv1_ref[...] + eps) * g1_ref[...]) + be1_ref[...]

    # feed-forward
    h1 = linear_t(x1, w1_ref, b1_ref)
    # TODO(synk): PyTorch nn.GELU() is the exact erf GELU; tanh approximation used here.
    h1 = jax.nn.gelu(h1, approximate=True)
    ff = linear_t(h1, w2_ref, b2_ref)

    # residual + BatchNorm1d
    x2 = x1 + ff
    x2 = (x2 - rm2_ref[...]) * (jax.lax.rsqrt(rv2_ref[...] + eps) * g2_ref[...]) + be2_ref[...]

    out_ref[0] = x2.astype(out_ref.dtype)


def _const_spec(shape):
    # Full-array block with a constant block index -> stays resident in VMEM.
    return pl.BlockSpec(shape, lambda *_: (0,) * len(shape))


def tst_encoder_layer(src, params, *, n_heads, eps=1e-5):
    """src: (bs, q_len, d_model) f32. params: PyTorch-layout weights + BN running stats."""
    bs, L, D = src.shape
    wq, bq = params["W_Q"], params["b_Q"]
    wk, bk = params["W_K"], params["b_K"]
    wv, bv = params["W_V"], params["b_V"]
    wo, bo = params["W_O"], params["b_O"]
    w1, b1 = params["W1"], params["b1"]
    w2, b2 = params["W2"], params["b2"]

    d_k_head = wq.shape[0] // n_heads
    d_v_head = wv.shape[0] // n_heads
    d_ff = w1.shape[0]
    scale = float((D // n_heads) ** -0.5)

    row = lambda a: a.reshape(1, -1)   # 1-D params -> (1, n) for TPU-friendly 2-D layout

    kernel = functools.partial(
        _tst_encoder_layer_kernel,
        n_heads=n_heads, d_k=d_k_head, d_v=d_v_head, scale=scale, eps=float(eps))

    # Advisory cost hint so XLA can schedule neighbours around the custom call.
    flops = int(bs * (
        2 * L * D * (wq.shape[0] + wk.shape[0] + wv.shape[0])              # QKV
        + n_heads * (2 * L * L * d_k_head + 2 * L * L * d_v_head)          # QK^T, AV
        + 2 * L * wv.shape[0] * D                                          # out proj
        + 2 * L * D * d_ff + 2 * L * d_ff * D))                            # FFN
    transcendentals = int(bs * (n_heads * L * L + L * d_ff))
    bytes_accessed = int(4 * (2 * bs * L * D + sum(int(p.size) for p in params.values())))

    inputs = (
        src,
        wq, row(bq), wk, row(bk), wv, row(bv), wo, row(bo),
        w1, row(b1), w2, row(b2),
        row(params["bn1_gamma"]), row(params["bn1_beta"]),
        row(params["bn1_mean"]), row(params["bn1_var"]),
        row(params["bn2_gamma"]), row(params["bn2_beta"]),
        row(params["bn2_mean"]), row(params["bn2_var"]),
    )

    in_specs = [pl.BlockSpec((1, L, D), lambda b: (b, 0, 0))]
    in_specs += [_const_spec(a.shape) for a in inputs[1:]]

    return pl.pallas_call(
        kernel,
        out_shape=jax.ShapeDtypeStruct((bs, L, D), src.dtype),
        grid_spec=pltpu.PrefetchScalarGridSpec(
            num_scalar_prefetch=0,
            grid=(bs,),
            in_specs=in_specs,
            out_specs=pl.BlockSpec((1, L, D), lambda b: (b, 0, 0)),
        ),
        compiler_params=pltpu.CompilerParams(
            dimension_semantics=("parallel",)),
        cost_estimate=pl.CostEstimate(
            flops=flops, transcendentals=transcendentals,
            bytes_accessed=bytes_accessed),
    )(*inputs)


def reference_forward(src, params, *, n_heads, eps=1e-5):
    """Plain-JAX reference with identical semantics."""
    bs, L, D = src.shape
    d_k = params["W_Q"].shape[0] // n_heads
    d_v = params["W_V"].shape[0] // n_heads
    scale = (D // n_heads) ** -0.5

    lin = lambda x, w, b: x @ w.T + b
    q = lin(src, params["W_Q"], params["b_Q"]).reshape(bs, L, n_heads, d_k).transpose(0, 2, 1, 3)
    k = lin(src, params["W_K"], params["b_K"]).reshape(bs, L, n_heads, d_k).transpose(0, 2, 1, 3)
    v = lin(src, params["W_V"], params["b_V"]).reshape(bs, L, n_heads, d_v).transpose(0, 2, 1, 3)
    scores = jnp.einsum("bhqd,bhkd->bhqk", q, k) * scale
    attn = jax.nn.softmax(scores, axis=-1)
    o = jnp.einsum("bhqk,bhkd->bhqd", attn, v).transpose(0, 2, 1, 3).reshape(bs, L, n_heads * d_v)
    src2 = lin(o, params["W_O"], params["b_O"])

    bn = lambda x, g, b, m, var: (x - m) / jnp.sqrt(var + eps) * g + b
    x = bn(src + src2, params["bn1_gamma"], params["bn1_beta"],
           params["bn1_mean"], params["bn1_var"])
    h = jax.nn.gelu(lin(x, params["W1"], params["b1"]), approximate=True)
    ff = lin(h, params["W2"], params["b2"])
    return bn(x + ff, params["bn2_gamma"], params["bn2_beta"],
              params["bn2_mean"], params["bn2_var"])


if __name__ == "__main__":
    bs, q_len, d_model, n_heads, d_ff = 2, 16, 32, 4, 64

    key = jax.random.PRNGKey(0)
    ks = jax.random.split(key, 21)

    def lin_init(kw, kb, out_f, in_f):
        bound = 1.0 / (in_f ** 0.5)
        w = jax.random.uniform(kw, (out_f, in_f), minval=-bound, maxval=bound, dtype=jnp.float32)
        b = jax.random.uniform(kb, (out_f,), minval=-bound, maxval=bound, dtype=jnp.float32)
        return w, b

    W_Q, b_Q = lin_init(ks[0], ks[1], d_model, d_model)
    W_K, b_K = lin_init(ks[2], ks[3], d_model, d_model)
    W_V, b_V = lin_init(ks[4], ks[5], d_model, d_model)
    W_O, b_O = lin_init(ks[6], ks[7], d_model, d_model)
    W1, b1 = lin_init(ks[8], ks[9], d_ff, d_model)
    W2, b2 = lin_init(ks[10], ks[11], d_model, d_ff)

    params = dict(
        W_Q=W_Q, b_Q=b_Q, W_K=W_K, b_K=b_K, W_V=W_V, b_V=b_V,
        W_O=W_O, b_O=b_O, W1=W1, b1=b1, W2=W2, b2=b2,
        bn1_gamma=jax.random.uniform(ks[12], (d_model,), minval=0.5, maxval=1.5, dtype=jnp.float32),
        bn1_beta=0.1 * jax.random.normal(ks[13], (d_model,), dtype=jnp.float32),
        bn1_mean=0.1 * jax.random.normal(ks[14], (d_model,), dtype=jnp.float32),
        bn1_var=jax.random.uniform(ks[15], (d_model,), minval=0.5, maxval=1.5, dtype=jnp.float32),
        bn2_gamma=jax.random.uniform(ks[16], (d_model,), minval=0.5, maxval=1.5, dtype=jnp.float32),
        bn2_beta=0.1 * jax.random.normal(ks[17], (d_model,), dtype=jnp.float32),
        bn2_mean=0.1 * jax.random.normal(ks[18], (d_model,), dtype=jnp.float32),
        bn2_var=jax.random.uniform(ks[19], (d_model,), minval=0.5, maxval=1.5, dtype=jnp.float32),
    )

    src = jax.random.normal(ks[20], (bs, q_len, d_model), dtype=jnp.float32)

    out = tst_encoder_layer(src, params, n_heads=n_heads)
    out = jax.block_until_ready(out)

    ref = reference_forward(src, params, n_heads=n_heads)
    assert out.shape == (bs, q_len, d_model)
    assert jnp.allclose(out, ref, atol=1e-3, rtol=1e-3), float(jnp.max(jnp.abs(out - ref)))

    print("KERNEL_OK")
</pallas_src>

<mosaic_0001>
module attributes {stable_mosaic.version = 11 : i64} {
  func.func @_tst_encoder_layer_kernel(%arg0: i32, %arg1: memref<1x16x32xf32, #tpu.memory_space<vmem>>, %arg2: memref<32x32xf32, #tpu.memory_space<vmem>>, %arg3: memref<1x32xf32, #tpu.memory_space<vmem>>, %arg4: memref<32x32xf32, #tpu.memory_space<vmem>>, %arg5: memref<1x32xf32, #tpu.memory_space<vmem>>, %arg6: memref<32x32xf32, #tpu.memory_space<vmem>>, %arg7: memref<1x32xf32, #tpu.memory_space<vmem>>, %arg8: memref<32x32xf32, #tpu.memory_space<vmem>>, %arg9: memref<1x32xf32, #tpu.memory_space<vmem>>, %arg10: memref<64x32xf32, #tpu.memory_space<vmem>>, %arg11: memref<1x64xf32, #tpu.memory_space<vmem>>, %arg12: memref<32x64xf32, #tpu.memory_space<vmem>>, %arg13: memref<1x32xf32, #tpu.memory_space<vmem>>, %arg14: memref<1x32xf32, #tpu.memory_space<vmem>>, %arg15: memref<1x32xf32, #tpu.memory_space<vmem>>, %arg16: memref<1x32xf32, #tpu.memory_space<vmem>>, %arg17: memref<1x32xf32, #tpu.memory_space<vmem>>, %arg18: memref<1x32xf32, #tpu.memory_space<vmem>>, %arg19: memref<1x32xf32, #tpu.memory_space<vmem>>, %arg20: memref<1x32xf32, #tpu.memory_space<vmem>>, %arg21: memref<1x32xf32, #tpu.memory_space<vmem>>, %arg22: memref<1x16x32xf32, #tpu.memory_space<vmem>>) attributes {dimension_semantics = [#tpu.dimension_semantics<parallel>], iteration_bounds = array<i64: 2>, scalar_prefetch = 0 : i64, scratch_operands = 0 : i64, tpu.core_type = #tpu.core_type<tc>, window_params = [{transform_indices = @transform_0, window_bounds = array<i64: 1, 16, 32>}, {pipeline_mode = #tpu.pipeline_mode<synchronous>, transform_indices = @transform_1, window_bounds = array<i64: 32, 32>}, {pipeline_mode = #tpu.pipeline_mode<synchronous>, transform_indices = @transform_2, window_bounds = array<i64: 1, 32>}, {pipeline_mode = #tpu.pipeline_mode<synchronous>, transform_indices = @transform_3, window_bounds = array<i64: 32, 32>}, {pipeline_mode = #tpu.pipeline_mode<synchronous>, transform_indices = @transform_4, window_bounds = array<i64: 1, 32>}, {pipeline_mode = #tpu.pipeline_mode<synchronous>, transform_indices = @transform_5, window_bounds = array<i64: 32, 32>}, {pipeline_mode = #tpu.pipeline_mode<synchronous>, transform_indices = @transform_6, window_bounds = array<i64: 1, 32>}, {pipeline_mode = #tpu.pipeline_mode<synchronous>, transform_indices = @transform_7, window_bounds = array<i64: 32, 32>}, {pipeline_mode = #tpu.pipeline_mode<synchronous>, transform_indices = @transform_8, window_bounds = array<i64: 1, 32>}, {pipeline_mode = #tpu.pipeline_mode<synchronous>, transform_indices = @transform_9, window_bounds = array<i64: 64, 32>}, {pipeline_mode = #tpu.pipeline_mode<synchronous>, transform_indices = @transform_10, window_bounds = array<i64: 1, 64>}, {pipeline_mode = #tpu.pipeline_mode<synchronous>, transform_indices = @transform_11, window_bounds = array<i64: 32, 64>}, {pipeline_mode = #tpu.pipeline_mode<synchronous>, transform_indices = @transform_12, window_bounds = array<i64: 1, 32>}, {pipeline_mode = #tpu.pipeline_mode<synchronous>, transform_indices = @transform_13, window_bounds = array<i64: 1, 32>}, {pipeline_mode = #tpu.pipeline_mode<synchronous>, transform_indices = @transform_14, window_bounds = array<i64: 1, 32>}, {pipeline_mode = #tpu.pipeline_mode<synchronous>, transform_indices = @transform_15, window_bounds = array<i64: 1, 32>}, {pipeline_mode = #tpu.pipeline_mode<synchronous>, transform_indices = @transform_16, window_bounds = array<i64: 1, 32>}, {pipeline_mode = #tpu.pipeline_mode<synchronous>, transform_indices = @transform_17, window_bounds = array<i64: 1, 32>}, {pipeline_mode = #tpu.pipeline_mode<synchronous>, transform_indices = @transform_18, window_bounds = array<i64: 1, 32>}, {pipeline_mode = #tpu.pipeline_mode<synchronous>, transform_indices = @transform_19, window_bounds = array<i64: 1, 32>}, {pipeline_mode = #tpu.pipeline_mode<synchronous>, transform_indices = @transform_20, window_bounds = array<i64: 1, 32>}, {transform_indices = @transform_21, window_bounds = array<i64: 1, 16, 32>}]} {
    %c0 = arith.constant 0 : index
    %c0_0 = arith.constant 0 : index
    %c0_1 = arith.constant 0 : index
    %0 = vector.load %arg1[%c0, %c0_0, %c0_1] : memref<1x16x32xf32, #tpu.memory_space<vmem>>, vector<1x16x32xf32>
    %1 = vector.shape_cast %0 : vector<1x16x32xf32> to vector<16x32xf32>
    %c0_2 = arith.constant 0 : index
    %c0_3 = arith.constant 0 : index
    %2 = vector.load %arg2[%c0_2, %c0_3] : memref<32x32xf32, #tpu.memory_space<vmem>>, vector<32x32xf32>
    %cst = arith.constant dense<0.000000e+00> : vector<16x32xf32>
    %3 = tpu.matmul %1, %2, %cst {dimension_numbers = #tpu.dot_dimension_numbers<[1], [1], [0], [0], [0, 0, 1, 0], [], []>} : vector<16x32xf32>, vector<32x32xf32>, vector<16x32xf32> -> vector<16x32xf32>
    %c0_4 = arith.constant 0 : index
    %c0_5 = arith.constant 0 : index
    %4 = vector.load %arg3[%c0_4, %c0_5] : memref<1x32xf32, #tpu.memory_space<vmem>>, vector<1x32xf32>
    %5 = vector.broadcast %4 : vector<1x32xf32> to vector<16x32xf32>
    %6 = arith.addf %3, %5 : vector<16x32xf32>
    %c0_6 = arith.constant 0 : index
    %c0_7 = arith.constant 0 : index
    %7 = vector.load %arg4[%c0_6, %c0_7] : memref<32x32xf32, #tpu.memory_space<vmem>>, vector<32x32xf32>
    %cst_8 = arith.constant dense<0.000000e+00> : vector<16x32xf32>
    %8 = tpu.matmul %1, %7, %cst_8 {dimension_numbers = #tpu.dot_dimension_numbers<[1], [1], [0], [0], [0, 0, 1, 0], [], []>} : vector<16x32xf32>, vector<32x32xf32>, vector<16x32xf32> -> vector<16x32xf32>
    %c0_9 = arith.constant 0 : index
    %c0_10 = arith.constant 0 : index
    %9 = vector.load %arg5[%c0_9, %c0_10] : memref<1x32xf32, #tpu.memory_space<vmem>>, vector<1x32xf32>
    %10 = vector.broadcast %9 : vector<1x32xf32> to vector<16x32xf32>
    %11 = arith.addf %8, %10 : vector<16x32xf32>
    %c0_11 = arith.constant 0 : index
    %c0_12 = arith.constant 0 : index
    %12 = vector.load %arg6[%c0_11, %c0_12] : memref<32x32xf32, #tpu.memory_space<vmem>>, vector<32x32xf32>
    %cst_13 = arith.constant dense<0.000000e+00> : vector<16x32xf32>
    %13 = tpu.matmul %1, %12, %cst_13 {dimension_numbers = #tpu.dot_dimension_numbers<[1], [1], [0], [0], [0, 0, 1, 0], [], []>} : vector<16x32xf32>, vector<32x32xf32>, vector<16x32xf32> -> vector<16x32xf32>
    %c0_14 = arith.constant 0 : index
    %c0_15 = arith.constant 0 : index
    %14 = vector.load %arg7[%c0_14, %c0_15] : memref<1x32xf32, #tpu.memory_space<vmem>>, vector<1x32xf32>
    %15 = vector.broadcast %14 : vector<1x32xf32> to vector<16x32xf32>
    %16 = arith.addf %13, %15 : vector<16x32xf32>
    %c0_16 = arith.constant 0 : index
    %c0_17 = arith.constant 0 : index
    %17 = vector.load %arg9[%c0_16, %c0_17] : memref<1x32xf32, #tpu.memory_space<vmem>>, vector<1x32xf32>
    %18 = vector.extract_strided_slice %6 {offsets = [0, 0], sizes = [16, 8], strides = [1, 1]} : vector<16x32xf32> to vector<16x8xf32>
    %19 = vector.extract_strided_slice %11 {offsets = [0, 0], sizes = [16, 8], strides = [1, 1]} : vector<16x32xf32> to vector<16x8xf32>
    %20 = vector.extract_strided_slice %16 {offsets = [0, 0], sizes = [16, 8], strides = [1, 1]} : vector<16x32xf32> to vector<16x8xf32>
    %cst_18 = arith.constant dense<0.000000e+00> : vector<16x16xf32>
    %21 = tpu.matmul %18, %19, %cst_18 {dimension_numbers = #tpu.dot_dimension_numbers<[1], [1], [0], [0], [0, 0, 1, 0], [], []>} : vector<16x8xf32>, vector<16x8xf32>, vector<16x16xf32> -> vector<16x16xf32>
    %cst_19 = arith.constant 0.353553385 : f32
    %22 = vector.broadcast %cst_19 : f32 to vector<16x16xf32>
    %23 = arith.mulf %21, %22 : vector<16x16xf32>
    %cst_20 = arith.constant dense<0xFF800000> : vector<16xf32>
    %24 = vector.multi_reduction <maximumf>, %23, %cst_20 [1] : vector<16x16xf32> to vector<16xf32>
    %25 = vector.shape_cast %24 : vector<16xf32> to vector<16x1xf32>
    %26 = vector.broadcast %25 : vector<16x1xf32> to vector<16x16xf32>
    %27 = arith.subf %23, %26 : vector<16x16xf32>
    %28 = math.exp %27 : vector<16x16xf32>
    %cst_21 = arith.constant dense<0.000000e+00> : vector<16xf32>
    %29 = vector.multi_reduction <add>, %28, %cst_21 [1] : vector<16x16xf32> to vector<16xf32>
    %30 = vector.shape_cast %29 : vector<16xf32> to vector<16x1xf32>
    %31 = vector.broadcast %30 : vector<16x1xf32> to vector<16x16xf32>
    %32 = arith.divf %28, %31 : vector<16x16xf32>
    %cst_22 = arith.constant dense<0.000000e+00> : vector<16x8xf32>
    %33 = tpu.matmul %32, %20, %cst_22 {dimension_numbers = #tpu.dot_dimension_numbers<[1], [0], [0], [1], [0, 0, 1, 1], [], []>} : vector<16x16xf32>, vector<16x8xf32>, vector<16x8xf32> -> vector<16x8xf32>
    %c0_23 = arith.constant 0 : index
    %c0_24 = arith.constant 0 : index
    %34 = vector.load %arg8[%c0_23, %c0_24] : memref<32x32xf32, #tpu.memory_space<vmem>>, vector<32x8xf32>
    %cst_25 = arith.constant dense<0.000000e+00> : vector<16x32xf32>
    %35 = tpu.matmul %33, %34, %cst_25 {dimension_numbers = #tpu.dot_dimension_numbers<[1], [1], [0], [0], [0, 0, 1, 0], [], []>} : vector<16x8xf32>, vector<32x8xf32>, vector<16x32xf32> -> vector<16x32xf32>
    %36 = vector.broadcast %17 : vector<1x32xf32> to vector<16x32xf32>
    %37 = arith.addf %36, %35 : vector<16x32xf32>
    %38 = vector.extract_strided_slice %6 {offsets = [0, 8], sizes = [16, 8], strides = [1, 1]} : vector<16x32xf32> to vector<16x8xf32>
    %39 = vector.extract_strided_slice %11 {offsets = [0, 8], sizes = [16, 8], strides = [1, 1]} : vector<16x32xf32> to vector<16x8xf32>
    %40 = vector.extract_strided_slice %16 {offsets = [0, 8], sizes = [16, 8], strides = [1, 1]} : vector<16x32xf32> to vector<16x8xf32>
    %cst_26 = arith.constant dense<0.000000e+00> : vector<16x16xf32>
    %41 = tpu.matmul %38, %39, %cst_26 {dimension_numbers = #tpu.dot_dimension_numbers<[1], [1], [0], [0], [0, 0, 1, 0], [], []>} : vector<16x8xf32>, vector<16x8xf32>, vector<16x16xf32> -> vector<16x16xf32>
    %cst_27 = arith.constant 0.353553385 : f32
    %42 = vector.broadcast %cst_27 : f32 to vector<16x16xf32>
    %43 = arith.mulf %41, %42 : vector<16x16xf32>
    %cst_28 = arith.constant dense<0xFF800000> : vector<16xf32>
    %44 = vector.multi_reduction <maximumf>, %43, %cst_28 [1] : vector<16x16xf32> to vector<16xf32>
    %45 = vector.shape_cast %44 : vector<16xf32> to vector<16x1xf32>
    %46 = vector.broadcast %45 : vector<16x1xf32> to vector<16x16xf32>
    %47 = arith.subf %43, %46 : vector<16x16xf32>
    %48 = math.exp %47 : vector<16x16xf32>
    %cst_29 = arith.constant dense<0.000000e+00> : vector<16xf32>
    %49 = vector.multi_reduction <add>, %48, %cst_29 [1] : vector<16x16xf32> to vector<16xf32>
    %50 = vector.shape_cast %49 : vector<16xf32> to vector<16x1xf32>
    %51 = vector.broadcast %50 : vector<16x1xf32> to vector<16x16xf32>
    %52 = arith.divf %48, %51 : vector<16x16xf32>
    %cst_30 = arith.constant dense<0.000000e+00> : vector<16x8xf32>
    %53 = tpu.matmul %52, %40, %cst_30 {dimension_numbers = #tpu.dot_dimension_numbers<[1], [0], [0], [1], [0, 0, 1, 1], [], []>} : vector<16x16xf32>, vector<16x8xf32>, vector<16x8xf32> -> vector<16x8xf32>
    %c0_31 = arith.constant 0 : index
    %c8 = arith.constant 8 : index
    %54 = vector.load %arg8[%c0_31, %c8] : memref<32x32xf32, #tpu.memory_space<vmem>>, vector<32x8xf32>
    %cst_32 = arith.constant dense<0.000000e+00> : vector<16x32xf32>
    %55 = tpu.matmul %53, %54, %cst_32 {dimension_numbers = #tpu.dot_dimension_numbers<[1], [1], [0], [0], [0, 0, 1, 0], [], []>} : vector<16x8xf32>, vector<32x8xf32>, vector<16x32xf32> -> vector<16x32xf32>
    %56 = arith.addf %37, %55 : vector<16x32xf32>
    %57 = vector.extract_strided_slice %6 {offsets = [0, 16], sizes = [16, 8], strides = [1, 1]} : vector<16x32xf32> to vector<16x8xf32>
    %58 = vector.extract_strided_slice %11 {offsets = [0, 16], sizes = [16, 8], strides = [1, 1]} : vector<16x32xf32> to vector<16x8xf32>
    %59 = vector.extract_strided_slice %16 {offsets = [0, 16], sizes = [16, 8], strides = [1, 1]} : vector<16x32xf32> to vector<16x8xf32>
    %cst_33 = arith.constant dense<0.000000e+00> : vector<16x16xf32>
    %60 = tpu.matmul %57, %58, %cst_33 {dimension_numbers = #tpu.dot_dimension_numbers<[1], [1], [0], [0], [0, 0, 1, 0], [], []>} : vector<16x8xf32>, vector<16x8xf32>, vector<16x16xf32> -> vector<16x16xf32>
    %cst_34 = arith.constant 0.353553385 : f32
    %61 = vector.broadcast %cst_34 : f32 to vector<16x16xf32>
    %62 = arith.mulf %60, %61 : vector<16x16xf32>
    %cst_35 = arith.constant dense<0xFF800000> : vector<16xf32>
    %63 = vector.multi_reduction <maximumf>, %62, %cst_35 [1] : vector<16x16xf32> to vector<16xf32>
    %64 = vector.shape_cast %63 : vector<16xf32> to vector<16x1xf32>
    %65 = vector.broadcast %64 : vector<16x1xf32> to vector<16x16xf32>
    %66 = arith.subf %62, %65 : vector<16x16xf32>
    %67 = math.exp %66 : vector<16x16xf32>
    %cst_36 = arith.constant dense<0.000000e+00> : vector<16xf32>
    %68 = vector.multi_reduction <add>, %67, %cst_36 [1] : vector<16x16xf32> to vector<16xf32>
    %69 = vector.shape_cast %68 : vector<16xf32> to vector<16x1xf32>
    %70 = vector.broadcast %69 : vector<16x1xf32> to vector<16x16xf32>
    %71 = arith.divf %67, %70 : vector<16x16xf32>
    %cst_37 = arith.constant dense<0.000000e+00> : vector<16x8xf32>
    %72 = tpu.matmul %71, %59, %cst_37 {dimension_numbers = #tpu.dot_dimension_numbers<[1], [0], [0], [1], [0, 0, 1, 1], [], []>} : vector<16x16xf32>, vector<16x8xf32>, vector<16x8xf32> -> vector<16x8xf32>
    %c0_38 = arith.constant 0 : index
    %c16 = arith.constant 16 : index
    %73 = vector.load %arg8[%c0_38, %c16] : memref<32x32xf32, #tpu.memory_space<vmem>>, vector<32x8xf32>
    %cst_39 = arith.constant dense<0.000000e+00> : vector<16x32xf32>
    %74 = tpu.matmul %72, %73, %cst_39 {dimension_numbers = #tpu.dot_dimension_numbers<[1], [1], [0], [0], [0, 0, 1, 0], [], []>} : vector<16x8xf32>, vector<32x8xf32>, vector<16x32xf32> -> vector<16x32xf32>
    %75 = arith.addf %56, %74 : vector<16x32xf32>
    %76 = vector.extract_strided_slice %6 {offsets = [0, 24], sizes = [16, 8], strides = [1, 1]} : vector<16x32xf32> to vector<16x8xf32>
    %77 = vector.extract_strided_slice %11 {offsets = [0, 24], sizes = [16, 8], strides = [1, 1]} : vector<16x32xf32> to vector<16x8xf32>
    %78 = vector.extract_strided_slice %16 {offsets = [0, 24], sizes = [16, 8], strides = [1, 1]} : vector<16x32xf32> to vector<16x8xf32>
    %cst_40 = arith.constant dense<0.000000e+00> : vector<16x16xf32>
    %79 = tpu.matmul %76, %77, %cst_40 {dimension_numbers = #tpu.dot_dimension_numbers<[1], [1], [0], [0], [0, 0, 1, 0], [], []>} : vector<16x8xf32>, vector<16x8xf32>, vector<16x16xf32> -> vector<16x16xf32>
    %cst_41 = arith.constant 0.353553385 : f32
    %80 = vector.broadcast %cst_41 : f32 to vector<16x16xf32>
    %81 = arith.mulf %79, %80 : vector<16x16xf32>
    %cst_42 = arith.constant dense<0xFF800000> : vector<16xf32>
    %82 = vector.multi_reduction <maximumf>, %81, %cst_42 [1] : vector<16x16xf32> to vector<16xf32>
    %83 = vector.shape_cast %82 : vector<16xf32> to vector<16x1xf32>
    %84 = vector.broadcast %83 : vector<16x1xf32> to vector<16x16xf32>
    %85 = arith.subf %81, %84 : vector<16x16xf32>
    %86 = math.exp %85 : vector<16x16xf32>
    %cst_43 = arith.constant dense<0.000000e+00> : vector<16xf32>
    %87 = vector.multi_reduction <add>, %86, %cst_43 [1] : vector<16x16xf32> to vector<16xf32>
    %88 = vector.shape_cast %87 : vector<16xf32> to vector<16x1xf32>
    %89 = vector.broadcast %88 : vector<16x1xf32> to vector<16x16xf32>
    %90 = arith.divf %86, %89 : vector<16x16xf32>
    %cst_44 = arith.constant dense<0.000000e+00> : vector<16x8xf32>
    %91 = tpu.matmul %90, %78, %cst_44 {dimension_numbers = #tpu.dot_dimension_numbers<[1], [0], [0], [1], [0, 0, 1, 1], [], []>} : vector<16x16xf32>, vector<16x8xf32>, vector<16x8xf32> -> vector<16x8xf32>
    %c0_45 = arith.constant 0 : index
    %c24 = arith.constant 24 : index
    %92 = vector.load %arg8[%c0_45, %c24] : memref<32x32xf32, #tpu.memory_space<vmem>>, vector<32x8xf32>
    %cst_46 = arith.constant dense<0.000000e+00> : vector<16x32xf32>
    %93 = tpu.matmul %91, %92, %cst_46 {dimension_numbers = #tpu.dot_dimension_numbers<[1], [1], [0], [0], [0, 0, 1, 0], [], []>} : vector<16x8xf32>, vector<32x8xf32>, vector<16x32xf32> -> vector<16x32xf32>
    %94 = arith.addf %75, %93 : vector<16x32xf32>
    %95 = arith.addf %1, %94 : vector<16x32xf32>
    %c0_47 = arith.constant 0 : index
    %c0_48 = arith.constant 0 : index
    %96 = vector.load %arg16[%c0_47, %c0_48] : memref<1x32xf32, #tpu.memory_space<vmem>>, vector<1x32xf32>
    %97 = vector.broadcast %96 : vector<1x32xf32> to vector<16x32xf32>
    %98 = arith.subf %95, %97 : vector<16x32xf32>
    %c0_49 = arith.constant 0 : index
    %c0_50 = arith.constant 0 : index
    %99 = vector.load %arg17[%c0_49, %c0_50] : memref<1x32xf32, #tpu.memory_space<vmem>>, vector<1x32xf32>
    %cst_51 = arith.constant 9.99999974E-6 : f32
    %100 = vector.broadcast %cst_51 : f32 to vector<1x32xf32>
    %101 = arith.addf %99, %100 : vector<1x32xf32>
    %102 = math.rsqrt %101 : vector<1x32xf32>
    %c0_52 = arith.constant 0 : index
    %c0_53 = arith.constant 0 : index
    %103 = vector.load %arg14[%c0_52, %c0_53] : memref<1x32xf32, #tpu.memory_space<vmem>>, vector<1x32xf32>
    %104 = arith.mulf %102, %103 : vector<1x32xf32>
    %105 = vector.broadcast %104 : vector<1x32xf32> to vector<16x32xf32>
    %106 = arith.mulf %98, %105 : vector<16x32xf32>
    %c0_54 = arith.constant 0 : index
    %c0_55 = arith.constant 0 : index
    %107 = vector.load %arg15[%c0_54, %c0_55] : memref<1x32xf32, #tpu.memory_space<vmem>>, vector<1x32xf32>
    %108 = vector.broadcast %107 : vector<1x32xf32> to vector<16x32xf32>
    %109 = arith.addf %106, %108 : vector<16x32xf32>
    %c0_56 = arith.constant 0 : index
    %c0_57 = arith.constant 0 : index
    %110 = vector.load %arg10[%c0_56, %c0_57] : memref<64x32xf32, #tpu.memory_space<vmem>>, vector<64x32xf32>
    %cst_58 = arith.constant dense<0.000000e+00> : vector<16x64xf32>
    %111 = tpu.matmul %109, %110, %cst_58 {dimension_numbers = #tpu.dot_dimension_numbers<[1], [1], [0], [0], [0, 0, 1, 0], [], []>} : vector<16x32xf32>, vector<64x32xf32>, vector<16x64xf32> -> vector<16x64xf32>
    %c0_59 = arith.constant 0 : index
    %c0_60 = arith.constant 0 : index
    %112 = vector.load %arg11[%c0_59, %c0_60] : memref<1x64xf32, #tpu.memory_space<vmem>>, vector<1x64xf32>
    %113 = vector.broadcast %112 : vector<1x64xf32> to vector<16x64xf32>
    %114 = arith.addf %111, %113 : vector<16x64xf32>
    %115 = arith.mulf %114, %114 : vector<16x64xf32>
    %116 = arith.mulf %114, %115 : vector<16x64xf32>
    %cst_61 = arith.constant 4.471500e-02 : f32
    %117 = vector.broadcast %cst_61 : f32 to vector<16x64xf32>
    %118 = arith.mulf %117, %116 : vector<16x64xf32>
    %119 = arith.addf %114, %118 : vector<16x64xf32>
    %cst_62 = arith.constant 0.797884583 : f32
    %120 = vector.broadcast %cst_62 : f32 to vector<16x64xf32>
    %121 = arith.mulf %120, %119 : vector<16x64xf32>
    %122 = math.tanh %121 : vector<16x64xf32>
    %cst_63 = arith.constant 1.000000e+00 : f32
    %123 = vector.broadcast %cst_63 : f32 to vector<16x64xf32>
    %124 = arith.addf %123, %122 : vector<16x64xf32>
    %cst_64 = arith.constant 5.000000e-01 : f32
    %125 = vector.broadcast %cst_64 : f32 to vector<16x64xf32>
    %126 = arith.mulf %125, %124 : vector<16x64xf32>
    %127 = arith.mulf %114, %126 : vector<16x64xf32>
    %c0_65 = arith.constant 0 : index
    %c0_66 = arith.constant 0 : index
    %128 = vector.load %arg12[%c0_65, %c0_66] : memref<32x64xf32, #tpu.memory_space<vmem>>, vector<32x64xf32>
    %cst_67 = arith.constant dense<0.000000e+00> : vector<16x32xf32>
    %129 = tpu.matmul %127, %128, %cst_67 {dimension_numbers = #tpu.dot_dimension_numbers<[1], [1], [0], [0], [0, 0, 1, 0], [], []>} : vector<16x64xf32>, vector<32x64xf32>, vector<16x32xf32> -> vector<16x32xf32>
    %c0_68 = arith.constant 0 : index
    %c0_69 = arith.constant 0 : index
    %130 = vector.load %arg13[%c0_68, %c0_69] : memref<1x32xf32, #tpu.memory_space<vmem>>, vector<1x32xf32>
    %131 = vector.broadcast %130 : vector<1x32xf32> to vector<16x32xf32>
    %132 = arith.addf %129, %131 : vector<16x32xf32>
    %133 = arith.addf %109, %132 : vector<16x32xf32>
    %c0_70 = arith.constant 0 : index
    %c0_71 = arith.constant 0 : index
    %134 = vector.load %arg20[%c0_70, %c0_71] : memref<1x32xf32, #tpu.memory_space<vmem>>, vector<1x32xf32>
    %135 = vector.broadcast %134 : vector<1x32xf32> to vector<16x32xf32>
    %136 = arith.subf %133, %135 : vector<16x32xf32>
    %c0_72 = arith.constant 0 : index
    %c0_73 = arith.constant 0 : index
    %137 = vector.load %arg21[%c0_72, %c0_73] : memref<1x32xf32, #tpu.memory_space<vmem>>, vector<1x32xf32>
    %cst_74 = arith.constant 9.99999974E-6 : f32
    %138 = vector.broadcast %cst_74 : f32 to vector<1x32xf32>
    %139 = arith.addf %137, %138 : vector<1x32xf32>
    %140 = math.rsqrt %139 : vector<1x32xf32>
    %c0_75 = arith.constant 0 : index
    %c0_76 = arith.constant 0 : index
    %141 = vector.load %arg18[%c0_75, %c0_76] : memref<1x32xf32, #tpu.memory_space<vmem>>, vector<1x32xf32>
    %142 = arith.mulf %140, %141 : vector<1x32xf32>
    %143 = vector.broadcast %142 : vector<1x32xf32> to vector<16x32xf32>
    %144 = arith.mulf %136, %143 : vector<16x32xf32>
    %c0_77 = arith.constant 0 : index
    %c0_78 = arith.constant 0 : index
    %145 = vector.load %arg19[%c0_77, %c0_78] : memref<1x32xf32, #tpu.memory_space<vmem>>, vector<1x32xf32>
    %146 = vector.broadcast %145 : vector<1x32xf32> to vector<16x32xf32>
    %147 = arith.addf %144, %146 : vector<16x32xf32>
    %c0_79 = arith.constant 0 : index
    %c0_80 = arith.constant 0 : index
    %c0_81 = arith.constant 0 : index
    %148 = vector.load %arg22[%c0_79, %c0_80, %c0_81] : memref<1x16x32xf32, #tpu.memory_space<vmem>>, vector<1x16x32xf32>
    %149 = vector.shape_cast %148 : vector<1x16x32xf32> to vector<16x32xf32>
    %150 = vector.shape_cast %147 : vector<16x32xf32> to vector<1x16x32xf32>
    tpu.vector_store %arg22[%c0_79, %c0_80, %c0_81], %150 {strides = array<i32>} : memref<1x16x32xf32, #tpu.memory_space<vmem>>, vector<1x16x32xf32>,
    return
  }
  func.func @transform_0(%arg0: i32) -> (i32, i32, i32) {
    %c0_i32 = arith.constant 0 : i32
    %c0_i32_0 = arith.constant 0 : i32
    %c0_i32_1 = arith.constant 0 : i32
    return %arg0, %c0_i32, %c0_i32_0 : i32, i32, i32
  }
  func.func @transform_1(%arg0: i32) -> (i32, i32) {
    %c0_i32 = arith.constant 0 : i32
    %c0_i32_0 = arith.constant 0 : i32
    %c0_i32_1 = arith.constant 0 : i32
    return %c0_i32, %c0_i32_0 : i32, i32
  }
  func.func @transform_2(%arg0: i32) -> (i32, i32) {
    %c0_i32 = arith.constant 0 : i32
    %c0_i32_0 = arith.constant 0 : i32
    %c0_i32_1 = arith.constant 0 : i32
    return %c0_i32, %c0_i32_0 : i32, i32
  }
  func.func @transform_3(%arg0: i32) -> (i32, i32) {
    %c0_i32 = arith.constant 0 : i32
    %c0_i32_0 = arith.constant 0 : i32
    %c0_i32_1 = arith.constant 0 : i32
    return %c0_i32, %c0_i32_0 : i32, i32
  }
  func.func @transform_4(%arg0: i32) -> (i32, i32) {
    %c0_i32 = arith.constant 0 : i32
    %c0_i32_0 = arith.constant 0 : i32
    %c0_i32_1 = arith.constant 0 : i32
    return %c0_i32, %c0_i32_0 : i32, i32
  }
  func.func @transform_5(%arg0: i32) -> (i32, i32) {
    %c0_i32 = arith.constant 0 : i32
    %c0_i32_0 = arith.constant 0 : i32
    %c0_i32_1 = arith.constant 0 : i32
    return %c0_i32, %c0_i32_0 : i32, i32
  }
  func.func @transform_6(%arg0: i32) -> (i32, i32) {
    %c0_i32 = arith.constant 0 : i32
    %c0_i32_0 = arith.constant 0 : i32
    %c0_i32_1 = arith.constant 0 : i32
    return %c0_i32, %c0_i32_0 : i32, i32
  }
  func.func @transform_7(%arg0: i32) -> (i32, i32) {
    %c0_i32 = arith.constant 0 : i32
    %c0_i32_0 = arith.constant 0 : i32
    %c0_i32_1 = arith.constant 0 : i32
    return %c0_i32, %c0_i32_0 : i32, i32
  }
  func.func @transform_8(%arg0: i32) -> (i32, i32) {
    %c0_i32 = arith.constant 0 : i32
    %c0_i32_0 = arith.constant 0 : i32
    %c0_i32_1 = arith.constant 0 : i32
    return %c0_i32, %c0_i32_0 : i32, i32
  }
  func.func @transform_9(%arg0: i32) -> (i32, i32) {
    %c0_i32 = arith.constant 0 : i32
    %c0_i32_0 = arith.constant 0 : i32
    %c0_i32_1 = arith.constant 0 : i32
    return %c0_i32, %c0_i32_0 : i32, i32
  }
  func.func @transform_10(%arg0: i32) -> (i32, i32) {
    %c0_i32 = arith.constant 0 : i32
    %c0_i32_0 = arith.constant 0 : i32
    %c0_i32_1 = arith.constant 0 : i32
    return %c0_i32, %c0_i32_0 : i32, i32
  }
  func.func @transform_11(%arg0: i32) -> (i32, i32) {
    %c0_i32 = arith.constant 0 : i32
    %c0_i32_0 = arith.constant 0 : i32
    %c0_i32_1 = arith.constant 0 : i32
    return %c0_i32, %c0_i32_0 : i32, i32
  }
  func.func @transform_12(%arg0: i32) -> (i32, i32) {
    %c0_i32 = arith.constant 0 : i32
    %c0_i32_0 = arith.constant 0 : i32
    %c0_i32_1 = arith.constant 0 : i32
    return %c0_i32, %c0_i32_0 : i32, i32
  }
  func.func @transform_13(%arg0: i32) -> (i32, i32) {
    %c0_i32 = arith.constant 0 : i32
    %c0_i32_0 = arith.constant 0 : i32
    %c0_i32_1 = arith.constant 0 : i32
    return %c0_i32, %c0_i32_0 : i32, i32
  }
  func.func @transform_14(%arg0: i32) -> (i32, i32) {
    %c0_i32 = arith.constant 0 : i32
    %c0_i32_0 = arith.constant 0 : i32
    %c0_i32_1 = arith.constant 0 : i32
    return %c0_i32, %c0_i32_0 : i32, i32
  }
  func.func @transform_15(%arg0: i32) -> (i32, i32) {
    %c0_i32 = arith.constant 0 : i32
    %c0_i32_0 = arith.constant 0 : i32
    %c0_i32_1 = arith.constant 0 : i32
    return %c0_i32, %c0_i32_0 : i32, i32
  }
  func.func @transform_16(%arg0: i32) -> (i32, i32) {
    %c0_i32 = arith.constant 0 : i32
    %c0_i32_0 = arith.constant 0 : i32
    %c0_i32_1 = arith.constant 0 : i32
    return %c0_i32, %c0_i32_0 : i32, i32
  }
  func.func @transform_17(%arg0: i32) -> (i32, i32) {
    %c0_i32 = arith.constant 0 : i32
    %c0_i32_0 = arith.constant 0 : i32
    %c0_i32_1 = arith.constant 0 : i32
    return %c0_i32, %c0_i32_0 : i32, i32
  }
  func.func @transform_18(%arg0: i32) -> (i32, i32) {
    %c0_i32 = arith.constant 0 : i32
    %c0_i32_0 = arith.constant 0 : i32
    %c0_i32_1 = arith.constant 0 : i32
    return %c0_i32, %c0_i32_0 : i32, i32
  }
  func.func @transform_19(%arg0: i32) -> (i32, i32) {
    %c0_i32 = arith.constant 0 : i32
    %c0_i32_0 = arith.constant 0 : i32
    %c0_i32_1 = arith.constant 0 : i32
    return %c0_i32, %c0_i32_0 : i32, i32
  }
  func.func @transform_20(%arg0: i32) -> (i32, i32) {
    %c0_i32 = arith.constant 0 : i32
    %c0_i32_0 = arith.constant 0 : i32
    %c0_i32_1 = arith.constant 0 : i32
    return %c0_i32, %c0_i32_0 : i32, i32
  }
  func.func @transform_21(%arg0: i32) -> (i32, i32, i32) {
    %c0_i32 = arith.constant 0 : i32
    %c0_i32_0 = arith.constant 0 : i32
    %c0_i32_1 = arith.constant 0 : i32
    return %arg0, %c0_i32, %c0_i32_0 : i32, i32, i32
  }
}

</mosaic_0001>

<llo_original>
// kernel: tpu_custom_call.1
$region0: #{tpu_custom_call.1}
  #allocation0 [shape = 'u32[]', space=smem, size = 0x4, offset = 0x4, fixed_abs, tag = 'smem constant byte address 0x4 - core index']
  #allocation1 [shape = 'u32[144,128]{1,0:T(1,128)}', space=vmem, size = 0x12000, scoped, tag = 'internal scratch']
  %s0 = inlined_call_operand.vmem [shape: f32[2,16,32], index: 0, kind: input, shape index: {}]
  %s1 = inlined_call_operand.vmem [shape: f32[32,32], index: 1, kind: input, shape index: {}]
  %s2 = inlined_call_operand.vmem [shape: f32[1,32], index: 2, kind: input, shape index: {}]
  %s3 = inlined_call_operand.vmem [shape: f32[32,32], index: 3, kind: input, shape index: {}]
  %s4 = inlined_call_operand.vmem [shape: f32[1,32], index: 4, kind: input, shape index: {}]
  %s5 = inlined_call_operand.hbm [shape: f32[32,32], index: 5, kind: input, shape index: {}]
  %s6 = inlined_call_operand.hbm [shape: f32[1,32], index: 6, kind: input, shape index: {}]
  %s7 = inlined_call_operand.hbm [shape: f32[32,32], index: 7, kind: input, shape index: {}]
  %s8 = inlined_call_operand.hbm [shape: f32[1,32], index: 8, kind: input, shape index: {}]
  %s9 = inlined_call_operand.vmem [shape: f32[64,32], index: 9, kind: input, shape index: {}]
  %s10 = inlined_call_operand.vmem [shape: f32[1,64], index: 10, kind: input, shape index: {}]
  %s11 = inlined_call_operand.hbm [shape: f32[32,64], index: 11, kind: input, shape index: {}]
  %s12 = inlined_call_operand.vmem [shape: f32[1,32], index: 12, kind: input, shape index: {}]
  %s13 = inlined_call_operand.vmem [shape: f32[1,32], index: 13, kind: input, shape index: {}]
  %s14 = inlined_call_operand.vmem [shape: f32[1,32], index: 14, kind: input, shape index: {}]
  %s15 = inlined_call_operand.vmem [shape: f32[1,32], index: 15, kind: input, shape index: {}]
  %s16 = inlined_call_operand.vmem [shape: f32[1,32], index: 16, kind: input, shape index: {}]
  %s17 = inlined_call_operand.vmem [shape: f32[1,32], index: 17, kind: input, shape index: {}]
  %s18 = inlined_call_operand.vmem [shape: f32[1,32], index: 18, kind: input, shape index: {}]
  %s19 = inlined_call_operand.vmem [shape: f32[1,32], index: 19, kind: input, shape index: {}]
  %s20 = inlined_call_operand.vmem [shape: f32[1,32], index: 20, kind: input, shape index: {}]
  %s21 = inlined_call_operand.hbm [shape: f32[2,16,32], index: 21, kind: output, shape index: {}]
  %s22 = sld [smem:[#allocation0]]
  $region137: #{tpu_custom_call.1} parent=0
    _
  %s24 = ssub.s32 1, %s22
  %s25 = scalar_select 0, %s24, %s22
  $region1: #{tpu_custom_call.1} parent=0
    #allocation2 [shape = 'u8[16384]{0}', space=vmem, size = 0x4000, scoped, tag = 'input window, operand 5, single buffered']
    #allocation3 [shape = 's32[2]{0}', space=sflag, size = 0x8, scoped, tag = 'scoped memory for tpu_custom_call.1']
    #allocation4 [shape = 's32[2]{0}', space=sflag, size = 0x8, scoped, tag = 'scoped memory for tpu_custom_call.1']
    #allocation5 [shape = 'u8[512]{0}', space=vmem, size = 0x400, scoped, tag = 'input window, operand 6, single buffered']
    #allocation6 [shape = 's32[1]{0}', space=sflag, size = 0x4, scoped, tag = 'scoped memory for tpu_custom_call.1']
    #allocation7 [shape = 'u8[16384]{0}', space=vmem, size = 0x4000, scoped, tag = 'input window, operand 7, single buffered']
    #allocation8 [shape = 'u8[512]{0}', space=vmem, size = 0x400, scoped, tag = 'input window, operand 8, single buffered']
    #allocation9 [shape = 's32[1]{0}', space=sflag, size = 0x4, scoped, tag = 'scoped memory for tpu_custom_call.1']
    #allocation10 [shape = 'u8[16384]{0}', space=vmem, size = 0x4000, scoped, tag = 'input window, operand 11, single buffered']
    #allocation11 [shape = 'u8[16384]{0}', space=vmem, size = 0x4000, scoped, tag = 'output window, operand 0']
    %26 = vsyncpa [#allocation3], 0
    %27 = vsyncpa [#allocation6], 0
    %28 = vsyncpa [#allocation9], 0
    %29 = vsyncpa [#allocation4], 0
    %s30 = scalar_lea.sflag [#allocation4], 1
    %31 = vsyncpa %s30, 0
    loop: start=0, step=1, limit=4
    $region2: #{tpu_custom_call.1} parent=1 // loop_pre_header
      _
    $region3: #{tpu_custom_call.1} parent=1 // loop_header
      %s33 = sphi 0, %s37
      %p34 = scmp.ge.s32.totalorder %s33, 4
      %s43 = sphi 0, %s45
      %s46 = sphi 0, %s43
      %s47 = sphi 0, %s46
      %s63 = sphi 0, %s47
      %s67 = sphi 0, %s67
      %s69 = sphi 0, %s67
      %s70 = sphi 0, %s69
      %s84 = sphi 0, %s70
      %s88 = sphi 0, %s88
      %s90 = sphi 0, %s88
      %s91 = sphi 0, %s90
      %s105 = sphi 0, %s91
      %s109 = sphi 0, %s109
      %s111 = sphi 0, %s109
      %s112 = sphi 0, %s111
      %s126 = sphi 0, %s112
      %s130 = sphi 0, %s130
      %s132 = sphi 0, %s130
      %s133 = sphi 0, %s132
      %s147 = sphi 0, %s133
      %s151 = sphi 0, %s151
      %s153 = sphi 0, %s151
      %s154 = sphi 0, %s153
      %s168 = sphi 0, %s154
      %s172 = sphi 0, %s172
      %s174 = sphi 0, %s172
      %s175 = sphi 0, %s174
      %s189 = sphi 0, %s175
      %s193 = sphi 0, %s193
      %s195 = sphi 0, %s193
      %s196 = sphi 0, %s195
      %s210 = sphi 0, %s196
      %s214 = sphi 0, %s214
      %s216 = sphi 0, %s214
      %s217 = sphi 0, %s216
      %s231 = sphi 0, %s217
      %s235 = sphi 0, %s235
      %s237 = sphi 0, %s235
      %s238 = sphi 0, %s237
      %s252 = sphi 0, %s238
      %s256 = sphi 0, %s256
      %s258 = sphi 0, %s256
      %s259 = sphi 0, %s258
      %s273 = sphi 0, %s259
      %s277 = sphi 0, %s277
      %s279 = sphi 0, %s277
      %s280 = sphi 0, %s279
      %s294 = sphi 0, %s280
      %s298 = sphi 0, %s298
      %s300 = sphi 0, %s298
      %s301 = sphi 0, %s300
      %s315 = sphi 0, %s301
      %s319 = sphi 0, %s319
      %s321 = sphi 0, %s319
      %s322 = sphi 0, %s321
      %s336 = sphi 0, %s322
      %s340 = sphi 0, %s340
      %s342 = sphi 0, %s340
      %s343 = sphi 0, %s342
      %s357 = sphi 0, %s343
      %s361 = sphi 0, %s361
      %s363 = sphi 0, %s361
      %s364 = sphi 0, %s363
      %s378 = sphi 0, %s364
      %s382 = sphi 0, %s382
      %s384 = sphi 0, %s382
      %s385 = sphi 0, %s384
      %s399 = sphi 0, %s385
      %s403 = sphi 0, %s403
      %s405 = sphi 0, %s403
      %s406 = sphi 0, %s405
      %s420 = sphi 0, %s406
      %s424 = sphi 0, %s424
      %s426 = sphi 0, %s424
      %s427 = sphi 0, %s426
      %s441 = sphi 0, %s427
      %s445 = sphi 0, %s445
      %s447 = sphi 0, %s445
      %s448 = sphi 0, %s447
      %s462 = sphi 0, %s448
      %s466 = sphi 0, %s466
      %s468 = sphi 0, %s466
      %s469 = sphi 0, %s468
      %s483 = sphi 0, %s469
      %s489 = sphi 0, %s491
      %s492 = sphi 0, %s489
      %s493 = sphi 0, %s492
      %s509 = sphi 0, %s493
    $region4: #{tpu_custom_call.1} parent=1 // loop_header_branch
      %36 = sbr.rel (%p34) target = $region8
    $region5: #{tpu_custom_call.1} parent=1 // loop_body
      %s38 = ssub.s32 %s33, 1
      %s39 = ssub.s32 %s33, 2
      %s40 = sadd.s32 %s33, 1
      %s41 = ssub.s32 %s33, %s40
      %p42 = scmp.eq.s32.totalorder %s41, 0
      %s44 = sadd.s32 %s43, 1
      %s45 = scalar_select %p42, %s43, %s44
      %p48 = pneg %p42
      %p49 = scmp.eq.s32.totalorder %s33, 1
      %p50 = por %p48, %p49
      %p51 = scmp.ne.s32.totalorder %s43, %s46
      %p52 = scmp.eq.s32.totalorder %s33, 0
      %p53 = por %p51, %p52
      %p54 = scmp.ne.s32.totalorder %s43, %s46
      %p55 = scmp.eq.s32.totalorder %s38, 1
      %p56 = por %p54, %p55
      %p57 = scmp.ne.s32.totalorder %s46, %s47
      %p58 = scmp.eq.s32.totalorder %s38, 0
      %p59 = por %p57, %p58
      %p60 = scmp.ne.s32.totalorder %s46, %s47
      %p61 = scmp.eq.s32.totalorder %s39, 1
      %p62 = por %p60, %p61
      %p64 = scmp.ne.s32.totalorder %s47, %s63
      %p65 = scmp.eq.s32.totalorder %s39, 0
      %p66 = por %p64, %p65
      %s68 = sadd.s32 %s67, 1
      %p71 = scmp.eq.s32.totalorder %s33, 1
      %p72 = scmp.ne.s32.totalorder %s67, %s69
      %p73 = scmp.eq.s32.totalorder %s33, 0
      %p74 = por %p72, %p73
      %p75 = scmp.ne.s32.totalorder %s67, %s69
      %p76 = scmp.eq.s32.totalorder %s38, 1
      %p77 = por %p75, %p76
      %p78 = scmp.ne.s32.totalorder %s69, %s70
      %p79 = scmp.eq.s32.totalorder %s38, 0
      %p80 = por %p78, %p79
      %p81 = scmp.ne.s32.totalorder %s69, %s70
      %p82 = scmp.eq.s32.totalorder %s39, 1
      %p83 = por %p81, %p82
      %p85 = scmp.ne.s32.totalorder %s70, %s84
      %p86 = scmp.eq.s32.totalorder %s39, 0
      %p87 = por %p85, %p86
      %s89 = sadd.s32 %s88, 1
      %p92 = scmp.eq.s32.totalorder %s33, 1
      %p93 = scmp.ne.s32.totalorder %s88, %s90
      %p94 = scmp.eq.s32.totalorder %s33, 0
      %p95 = por %p93, %p94
      %p96 = scmp.ne.s32.totalorder %s88, %s90
      %p97 = scmp.eq.s32.totalorder %s38, 1
      %p98 = por %p96, %p97
      %p99 = scmp.ne.s32.totalorder %s90, %s91
      %p100 = scmp.eq.s32.totalorder %s38, 0
      %p101 = por %p99, %p100
      %p102 = scmp.ne.s32.totalorder %s90, %s91
      %p103 = scmp.eq.s32.totalorder %s39, 1
      %p104 = por %p102, %p103
      %p106 = scmp.ne.s32.totalorder %s91, %s105
      %p107 = scmp.eq.s32.totalorder %s39, 0
      %p108 = por %p106, %p107
      %s110 = sadd.s32 %s109, 1
      %p113 = scmp.eq.s32.totalorder %s33, 1
      %p114 = scmp.ne.s32.totalorder %s109, %s111
      %p115 = scmp.eq.s32.totalorder %s33, 0
      %p116 = por %p114, %p115
      %p117 = scmp.ne.s32.totalorder %s109, %s111
      %p118 = scmp.eq.s32.totalorder %s38, 1
      %p119 = por %p117, %p118
      %p120 = scmp.ne.s32.totalorder %s111, %s112
      %p121 = scmp.eq.s32.totalorder %s38, 0
      %p122 = por %p120, %p121
      %p123 = scmp.ne.s32.totalorder %s111, %s112
      %p124 = scmp.eq.s32.totalorder %s39, 1
      %p125 = por %p123, %p124
      %p127 = scmp.ne.s32.totalorder %s112, %s126
      %p128 = scmp.eq.s32.totalorder %s39, 0
      %p129 = por %p127, %p128
      %s131 = sadd.s32 %s130, 1
      %p134 = scmp.eq.s32.totalorder %s33, 1
      %p135 = scmp.ne.s32.totalorder %s130, %s132
      %p136 = scmp.eq.s32.totalorder %s33, 0
      %p137 = por %p135, %p136
      %p138 = scmp.ne.s32.totalorder %s130, %s132
      %p139 = scmp.eq.s32.totalorder %s38, 1
      %p140 = por %p138, %p139
      %p141 = scmp.ne.s32.totalorder %s132, %s133
      %p142 = scmp.eq.s32.totalorder %s38, 0
      %p143 = por %p141, %p142
      %p144 = scmp.ne.s32.totalorder %s132, %s133
      %p145 = scmp.eq.s32.totalorder %s39, 1
      %p146 = por %p144, %p145
      %p148 = scmp.ne.s32.totalorder %s133, %s147
      %p149 = scmp.eq.s32.totalorder %s39, 0
      %p150 = por %p148, %p149
      %s152 = sadd.s32 %s151, 1
      %p155 = scmp.eq.s32.totalorder %s33, 1
      %p156 = scmp.ne.s32.totalorder %s151, %s153
      %p157 = scmp.eq.s32.totalorder %s33, 0
      %p158 = por %p156, %p157
      %p159 = scmp.ne.s32.totalorder %s151, %s153
      %p160 = scmp.eq.s32.totalorder %s38, 1
      %p161 = por %p159, %p160
      %p162 = scmp.ne.s32.totalorder %s153, %s154
      %p163 = scmp.eq.s32.totalorder %s38, 0
      %p164 = por %p162, %p163
      %p165 = scmp.ne.s32.totalorder %s153, %s154
      %p166 = scmp.eq.s32.totalorder %s39, 1
      %p167 = por %p165, %p166
      %p169 = scmp.ne.s32.totalorder %s154, %s168
      %p170 = scmp.eq.s32.totalorder %s39, 0
      %p171 = por %p169, %p170
      %s173 = sadd.s32 %s172, 1
      %p176 = scmp.eq.s32.totalorder %s33, 1
      %p177 = scmp.ne.s32.totalorder %s172, %s174
      %p178 = scmp.eq.s32.totalorder %s33, 0
      %p179 = por %p177, %p178
      %p180 = scmp.ne.s32.totalorder %s172, %s174
      %p181 = scmp.eq.s32.totalorder %s38, 1
      %p182 = por %p180, %p181
      %p183 = scmp.ne.s32.totalorder %s174, %s175
      %p184 = scmp.eq.s32.totalorder %s38, 0
      %p185 = por %p183, %p184
      %p186 = scmp.ne.s32.totalorder %s174, %s175
      %p187 = scmp.eq.s32.totalorder %s39, 1
      %p188 = por %p186, %p187
      %p190 = scmp.ne.s32.totalorder %s175, %s189
      %p191 = scmp.eq.s32.totalorder %s39, 0
      %p192 = por %p190, %p191
      %s194 = sadd.s32 %s193, 1
      %p197 = scmp.eq.s32.totalorder %s33, 1
      %p198 = scmp.ne.s32.totalorder %s193, %s195
      %p199 = scmp.eq.s32.totalorder %s33, 0
      %p200 = por %p198, %p199
      %p201 = scmp.ne.s32.totalorder %s193, %s195
      %p202 = scmp.eq.s32.totalorder %s38, 1
      %p203 = por %p201, %p202
      %p204 = scmp.ne.s32.totalorder %s195, %s196
      %p205 = scmp.eq.s32.totalorder %s38, 0
      %p206 = por %p204, %p205
      %p207 = scmp.ne.s32.totalorder %s195, %s196
      %p208 = scmp.eq.s32.totalorder %s39, 1
      %p209 = por %p207, %p208
      %p211 = scmp.ne.s32.totalorder %s196, %s210
      %p212 = scmp.eq.s32.totalorder %s39, 0
      %p213 = por %p211, %p212
      %s215 = sadd.s32 %s214, 1
      %p218 = scmp.eq.s32.totalorder %s33, 1
      %p219 = scmp.ne.s32.totalorder %s214, %s216
      %p220 = scmp.eq.s32.totalorder %s33, 0
      %p221 = por %p219, %p220
      %p222 = scmp.ne.s32.totalorder %s214, %s216
      %p223 = scmp.eq.s32.totalorder %s38, 1
      %p224 = por %p222, %p223
      %p225 = scmp.ne.s32.totalorder %s216, %s217
      %p226 = scmp.eq.s32.totalorder %s38, 0
      %p227 = por %p225, %p226
      %p228 = scmp.ne.s32.totalorder %s216, %s217
      %p229 = scmp.eq.s32.totalorder %s39, 1
      %p230 = por %p228, %p229
      %p232 = scmp.ne.s32.totalorder %s217, %s231
      %p233 = scmp.eq.s32.totalorder %s39, 0
      %p234 = por %p232, %p233
      %s236 = sadd.s32 %s235, 1
      %p239 = scmp.eq.s32.totalorder %s33, 1
      %p240 = scmp.ne.s32.totalorder %s235, %s237
      %p241 = scmp.eq.s32.totalorder %s33, 0
      %p242 = por %p240, %p241
      %p243 = scmp.ne.s32.totalorder %s235, %s237
      %p244 = scmp.eq.s32.totalorder %s38, 1
      %p245 = por %p243, %p244
      %p246 = scmp.ne.s32.totalorder %s237, %s238
      %p247 = scmp.eq.s32.totalorder %s38, 0
      %p248 = por %p246, %p247
      %p249 = scmp.ne.s32.totalorder %s237, %s238
      %p250 = scmp.eq.s32.totalorder %s39, 1
      %p251 = por %p249, %p250
      %p253 = scmp.ne.s32.totalorder %s238, %s252
      %p254 = scmp.eq.s32.totalorder %s39, 0
      %p255 = por %p253, %p254
      %s257 = sadd.s32 %s256, 1
      %p260 = scmp.eq.s32.totalorder %s33, 1
      %p261 = scmp.ne.s32.totalorder %s256, %s258
      %p262 = scmp.eq.s32.totalorder %s33, 0
      %p263 = por %p261, %p262
      %p264 = scmp.ne.s32.totalorder %s256, %s258
      %p265 = scmp.eq.s32.totalorder %s38, 1
      %p266 = por %p264, %p265
      %p267 = scmp.ne.s32.totalorder %s258, %s259
      %p268 = scmp.eq.s32.totalorder %s38, 0
      %p269 = por %p267, %p268
      %p270 = scmp.ne.s32.totalorder %s258, %s259
      %p271 = scmp.eq.s32.totalorder %s39, 1
      %p272 = por %p270, %p271
      %p274 = scmp.ne.s32.totalorder %s259, %s273
      %p275 = scmp.eq.s32.totalorder %s39, 0
      %p276 = por %p274, %p275
      %s278 = sadd.s32 %s277, 1
      %p281 = scmp.eq.s32.totalorder %s33, 1
      %p282 = scmp.ne.s32.totalorder %s277, %s279
      %p283 = scmp.eq.s32.totalorder %s33, 0
      %p284 = por %p282, %p283
      %p285 = scmp.ne.s32.totalorder %s277, %s279
      %p286 = scmp.eq.s32.totalorder %s38, 1
      %p287 = por %p285, %p286
      %p288 = scmp.ne.s32.totalorder %s279, %s280
      %p289 = scmp.eq.s32.totalorder %s38, 0
      %p290 = por %p288, %p289
      %p291 = scmp.ne.s32.totalorder %s279, %s280
      %p292 = scmp.eq.s32.totalorder %s39, 1
      %p293 = por %p291, %p292
      %p295 = scmp.ne.s32.totalorder %s280, %s294
      %p296 = scmp.eq.s32.totalorder %s39, 0
      %p297 = por %p295, %p296
      %s299 = sadd.s32 %s298, 1
      %p302 = scmp.eq.s32.totalorder %s33, 1
      %p303 = scmp.ne.s32.totalorder %s298, %s300
      %p304 = scmp.eq.s32.totalorder %s33, 0
      %p305 = por %p303, %p304
      %p306 = scmp.ne.s32.totalorder %s298, %s300
      %p307 = scmp.eq.s32.totalorder %s38, 1
      %p308 = por %p306, %p307
      %p309 = scmp.ne.s32.totalorder %s300, %s301
      %p310 = scmp.eq.s32.totalorder %s38, 0
      %p311 = por %p309, %p310
      %p312 = scmp.ne.s32.totalorder %s300, %s301
      %p313 = scmp.eq.s32.totalorder %s39, 1
      %p314 = por %p312, %p313
      %p316 = scmp.ne.s32.totalorder %s301, %s315
      %p317 = scmp.eq.s32.totalorder %s39, 0
      %p318 = por %p316, %p317
      %s320 = sadd.s32 %s319, 1
      %p323 = scmp.eq.s32.totalorder %s33, 1
      %p324 = scmp.ne.s32.totalorder %s319, %s321
      %p325 = scmp.eq.s32.totalorder %s33, 0
      %p326 = por %p324, %p325
      %p327 = scmp.ne.s32.totalorder %s319, %s321
      %p328 = scmp.eq.s32.totalorder %s38, 1
      %p329 = por %p327, %p328
      %p330 = scmp.ne.s32.totalorder %s321, %s322
      %p331 = scmp.eq.s32.totalorder %s38, 0
      %p332 = por %p330, %p331
      %p333 = scmp.ne.s32.totalorder %s321, %s322
      %p334 = scmp.eq.s32.totalorder %s39, 1
      %p335 = por %p333, %p334
      %p337 = scmp.ne.s32.totalorder %s322, %s336
      %p338 = scmp.eq.s32.totalorder %s39, 0
      %p339 = por %p337, %p338
      %s341 = sadd.s32 %s340, 1
      %p344 = scmp.eq.s32.totalorder %s33, 1
      %p345 = scmp.ne.s32.totalorder %s340, %s342
      %p346 = scmp.eq.s32.totalorder %s33, 0
      %p347 = por %p345, %p346
      %p348 = scmp.ne.s32.totalorder %s340, %s342
      %p349 = scmp.eq.s32.totalorder %s38, 1
      %p350 = por %p348, %p349
      %p351 = scmp.ne.s32.totalorder %s342, %s343
      %p352 = scmp.eq.s32.totalorder %s38, 0
      %p353 = por %p351, %p352
      %p354 = scmp.ne.s32.totalorder %s342, %s343
      %p355 = scmp.eq.s32.totalorder %s39, 1
      %p356 = por %p354, %p355
      %p358 = scmp.ne.s32.totalorder %s343, %s357
      %p359 = scmp.eq.s32.totalorder %s39, 0
      %p360 = por %p358, %p359
      %s362 = sadd.s32 %s361, 1
      %p365 = scmp.eq.s32.totalorder %s33, 1
      %p366 = scmp.ne.s32.totalorder %s361, %s363
      %p367 = scmp.eq.s32.totalorder %s33, 0
      %p368 = por %p366, %p367
      %p369 = scmp.ne.s32.totalorder %s361, %s363
      %p370 = scmp.eq.s32.totalorder %s38, 1
      %p371 = por %p369, %p370
      %p372 = scmp.ne.s32.totalorder %s363, %s364
      %p373 = scmp.eq.s32.totalorder %s38, 0
      %p374 = por %p372, %p373
      %p375 = scmp.ne.s32.totalorder %s363, %s364
      %p376 = scmp.eq.s32.totalorder %s39, 1
      %p377 = por %p375, %p376
      %p379 = scmp.ne.s32.totalorder %s364, %s378
      %p380 = scmp.eq.s32.totalorder %s39, 0
      %p381 = por %p379, %p380
      %s383 = sadd.s32 %s382, 1
      %p386 = scmp.eq.s32.totalorder %s33, 1
      %p387 = scmp.ne.s32.totalorder %s382, %s384
      %p388 = scmp.eq.s32.totalorder %s33, 0
      %p389 = por %p387, %p388
      %p390 = scmp.ne.s32.totalorder %s382, %s384
      %p391 = scmp.eq.s32.totalorder %s38, 1
      %p392 = por %p390, %p391
      %p393 = scmp.ne.s32.totalorder %s384, %s385
      %p394 = scmp.eq.s32.totalorder %s38, 0
      %p395 = por %p393, %p394
      %p396 = scmp.ne.s32.totalorder %s384, %s385
      %p397 = scmp.eq.s32.totalorder %s39, 1
      %p398 = por %p396, %p397
      %p400 = scmp.ne.s32.totalorder %s385, %s399
      %p401 = scmp.eq.s32.totalorder %s39, 0
      %p402 = por %p400, %p401
      %s404 = sadd.s32 %s403, 1
      %p407 = scmp.eq.s32.totalorder %s33, 1
      %p408 = scmp.ne.s32.totalorder %s403, %s405
      %p409 = scmp.eq.s32.totalorder %s33, 0
      %p410 = por %p408, %p409
      %p411 = scmp.ne.s32.totalorder %s403, %s405
      %p412 = scmp.eq.s32.totalorder %s38, 1
      %p413 = por %p411, %p412
      %p414 = scmp.ne.s32.totalorder %s405, %s406
      %p415 = scmp.eq.s32.totalorder %s38, 0
      %p416 = por %p414, %p415
      %p417 = scmp.ne.s32.totalorder %s405, %s406
      %p418 = scmp.eq.s32.totalorder %s39, 1
      %p419 = por %p417, %p418
      %p421 = scmp.ne.s32.totalorder %s406, %s420
      %p422 = scmp.eq.s32.totalorder %s39, 0
      %p423 = por %p421, %p422
      %s425 = sadd.s32 %s424, 1
      %p428 = scmp.eq.s32.totalorder %s33, 1
      %p429 = scmp.ne.s32.totalorder %s424, %s426
      %p430 = scmp.eq.s32.totalorder %s33, 0
      %p431 = por %p429, %p430
      %p432 = scmp.ne.s32.totalorder %s424, %s426
      %p433 = scmp.eq.s32.totalorder %s38, 1
      %p434 = por %p432, %p433
      %p435 = scmp.ne.s32.totalorder %s426, %s427
      %p436 = scmp.eq.s32.totalorder %s38, 0
      %p437 = por %p435, %p436
      %p438 = scmp.ne.s32.totalorder %s426, %s427
      %p439 = scmp.eq.s32.totalorder %s39, 1
      %p440 = por %p438, %p439
      %p442 = scmp.ne.s32.totalorder %s427, %s441
      %p443 = scmp.eq.s32.totalorder %s39, 0
      %p444 = por %p442, %p443
      %s446 = sadd.s32 %s445, 1
      %p449 = scmp.eq.s32.totalorder %s33, 1
      %p450 = scmp.ne.s32.totalorder %s445, %s447
      %p451 = scmp.eq.s32.totalorder %s33, 0
      %p452 = por %p450, %p451
      %p453 = scmp.ne.s32.totalorder %s445, %s447
      %p454 = scmp.eq.s32.totalorder %s38, 1
      %p455 = por %p453, %p454
      %p456 = scmp.ne.s32.totalorder %s447, %s448
      %p457 = scmp.eq.s32.totalorder %s38, 0
      %p458 = por %p456, %p457
      %p459 = scmp.ne.s32.totalorder %s447, %s448
      %p460 = scmp.eq.s32.totalorder %s39, 1
      %p461 = por %p459, %p460
      %p463 = scmp.ne.s32.totalorder %s448, %s462
      %p464 = scmp.eq.s32.totalorder %s39, 0
      %p465 = por %p463, %p464
      %s467 = sadd.s32 %s466, 1
      %p470 = scmp.eq.s32.totalorder %s33, 1
      %p471 = scmp.ne.s32.totalorder %s466, %s468
      %p472 = scmp.eq.s32.totalorder %s33, 0
      %p473 = por %p471, %p472
      %p474 = scmp.ne.s32.totalorder %s466, %s468
      %p475 = scmp.eq.s32.totalorder %s38, 1
      %p476 = por %p474, %p475
      %p477 = scmp.ne.s32.totalorder %s468, %s469
      %p478 = scmp.eq.s32.totalorder %s38, 0
      %p479 = por %p477, %p478
      %p480 = scmp.ne.s32.totalorder %s468, %s469
      %p481 = scmp.eq.s32.totalorder %s39, 1
      %p482 = por %p480, %p481
      %p484 = scmp.ne.s32.totalorder %s469, %s483
      %p485 = scmp.eq.s32.totalorder %s39, 0
      %p486 = por %p484, %p485
      %s487 = ssub.s32 %s33, %s40
      %p488 = scmp.eq.s32.totalorder %s487, 0
      %s490 = sadd.s32 %s489, 1
      %s491 = scalar_select %p488, %s489, %s490
      %p494 = pneg %p488
      %p495 = scmp.eq.s32.totalorder %s33, 1
      %p496 = por %p494, %p495
      %p497 = scmp.ne.s32.totalorder %s489, %s492
      %p498 = scmp.eq.s32.totalorder %s33, 0
      %p499 = por %p497, %p498
      %p500 = scmp.ne.s32.totalorder %s489, %s492
      %p501 = scmp.eq.s32.totalorder %s38, 1
      %p502 = por %p500, %p501
      %p503 = scmp.ne.s32.totalorder %s492, %s493
      %p504 = scmp.eq.s32.totalorder %s38, 0
      %p505 = por %p503, %p504
      %p506 = scmp.ne.s32.totalorder %s492, %s493
      %p507 = scmp.eq.s32.totalorder %s39, 1
      %p508 = por %p506, %p507
      %p510 = scmp.ne.s32.totalorder %s493, %s509
      %p511 = scmp.eq.s32.totalorder %s39, 0
      %p512 = por %p510, %p511
      %p513 = scmp.le.s32.totalorder 1, %s33
      %p514 = scmp.lt.s32.totalorder %s33, 3
      %p515 = pnand %p513, %p514
      %p516 = pneg %p515
      // Predicated region
      $region9: #{tpu_custom_call.1} parent=5 // pred_check
        _
      $region10: #{tpu_custom_call.1} parent=5 // pred_check_branch
        %518 = sbr.rel (%p515) target = $region12
      $region11: #{tpu_custom_call.1} parent=5 // pred_region
        %s519 = ssub.s32 %s33, 1
        // Predicated region
        $region13: #{tpu_custom_call.1} parent=11 // pred_check
          %p520 = pneg %p80
        $region14: #{tpu_custom_call.1} parent=11 // pred_check_branch
          %522 = sbr.rel (%p520) target = $region16
        $region15: #{tpu_custom_call.1} parent=11 // pred_region
          _
        $region16: #{tpu_custom_call.1} parent=11 // pred_fallthru
          _
        // Predicated region
        $region17: #{tpu_custom_call.1} parent=11 // pred_check
          %p523 = pneg %p101
        $region18: #{tpu_custom_call.1} parent=11 // pred_check_branch
          %525 = sbr.rel (%p523) target = $region20
        $region19: #{tpu_custom_call.1} parent=11 // pred_region
          _
        $region20: #{tpu_custom_call.1} parent=11 // pred_fallthru
          _
        // Predicated region
        $region21: #{tpu_custom_call.1} parent=11 // pred_check
          %p526 = pneg %p122
        $region22: #{tpu_custom_call.1} parent=11 // pred_check_branch
          %528 = sbr.rel (%p526) target = $region24
        $region23: #{tpu_custom_call.1} parent=11 // pred_region
          _
        $region24: #{tpu_custom_call.1} parent=11 // pred_fallthru
          _
        // Predicated region
        $region25: #{tpu_custom_call.1} parent=11 // pred_check
          %p529 = pneg %p143
        $region26: #{tpu_custom_call.1} parent=11 // pred_check_branch
          %531 = sbr.rel (%p529) target = $region28
        $region27: #{tpu_custom_call.1} parent=11 // pred_region
          _
        $region28: #{tpu_custom_call.1} parent=11 // pred_fallthru
          _
        // Predicated region
        $region29: #{tpu_custom_call.1} parent=11 // pred_check
          %p532 = pneg %p164
        $region30: #{tpu_custom_call.1} parent=11 // pred_check_branch
          %534 = sbr.rel (%p532) target = $region32
        $region31: #{tpu_custom_call.1} parent=11 // pred_region
          %s536 = ssub.s32 512, 512
          %537 = vsyncadd [#allocation3], %s536
          %s538 = sshll.u32 [#allocation2], 4
          %s539 = int_to_ptr.vmem [resolvable:$true] %s538
          %544 = dma.hbm_to_vmem [thread:$0]  %s5, 512, %s539, [#allocation3], 128, 128, 8
        $region32: #{tpu_custom_call.1} parent=11 // pred_fallthru
          _
        // Predicated region
        $region33: #{tpu_custom_call.1} parent=11 // pred_check
          %p545 = pneg %p185
        $region34: #{tpu_custom_call.1} parent=11 // pred_check_branch
          %547 = sbr.rel (%p545) target = $region36
        $region35: #{tpu_custom_call.1} parent=11 // pred_region
          %s549 = ssub.s32 16, 16
          %550 = vsyncadd [#allocation6], %s549
          %s552 = sshll.u32 [#allocation5], 4
          %s553 = int_to_ptr.vmem [resolvable:$true] %s552
          %555 = dma.hbm_to_vmem [thread:$0]  %s6, 16, %s553, [#allocation6]
        $region36: #{tpu_custom_call.1} parent=11 // pred_fallthru
          _
        // Predicated region
        $region37: #{tpu_custom_call.1} parent=11 // pred_check
          %p556 = pneg %p206
        $region38: #{tpu_custom_call.1} parent=11 // pred_check_branch
          %558 = sbr.rel (%p556) target = $region40
        $region39: #{tpu_custom_call.1} parent=11 // pred_region
          %s560 = ssub.s32 512, 512
          %561 = vsyncadd [#allocation6], %s560
          %s562 = sshll.u32 [#allocation7], 4
          %s563 = int_to_ptr.vmem [resolvable:$true] %s562
          %568 = dma.hbm_to_vmem [thread:$0]  %s7, 512, %s563, [#allocation6], 128, 128, 8
        $region40: #{tpu_custom_call.1} parent=11 // pred_fallthru
          _
        // Predicated region
        $region41: #{tpu_custom_call.1} parent=11 // pred_check
          %p569 = pneg %p227
        $region42: #{tpu_custom_call.1} parent=11 // pred_check_branch
          %571 = sbr.rel (%p569) target = $region44
        $region43: #{tpu_custom_call.1} parent=11 // pred_region
          %s573 = ssub.s32 16, 16
          %574 = vsyncadd [#allocation9], %s573
          %s576 = sshll.u32 [#allocation8], 4
          %s577 = int_to_ptr.vmem [resolvable:$true] %s576
          %579 = dma.hbm_to_vmem [thread:$0]  %s8, 16, %s577, [#allocation9]
        $region44: #{tpu_custom_call.1} parent=11 // pred_fallthru
          _
        // Predicated region
        $region45: #{tpu_custom_call.1} parent=11 // pred_check
          %p580 = pneg %p248
        $region46: #{tpu_custom_call.1} parent=11 // pred_check_branch
          %582 = sbr.rel (%p580) target = $region48
        $region47: #{tpu_custom_call.1} parent=11 // pred_region
          _
        $region48: #{tpu_custom_call.1} parent=11 // pred_fallthru
          _
        // Predicated region
        $region49: #{tpu_custom_call.1} parent=11 // pred_check
          %p583 = pneg %p269
        $region50: #{tpu_custom_call.1} parent=11 // pred_check_branch
          %585 = sbr.rel (%p583) target = $region52
        $region51: #{tpu_custom_call.1} parent=11 // pred_region
          _
        $region52: #{tpu_custom_call.1} parent=11 // pred_fallthru
          _
        // Predicated region
        $region53: #{tpu_custom_call.1} parent=11 // pred_check
          %p586 = pneg %p290
        $region54: #{tpu_custom_call.1} parent=11 // pred_check_branch
          %588 = sbr.rel (%p586) target = $region56
        $region55: #{tpu_custom_call.1} parent=11 // pred_region
          %s590 = ssub.s32 512, 512
          %591 = vsyncadd [#allocation9], %s590
          %s592 = sshll.u32 [#allocation10], 4
          %s593 = int_to_ptr.vmem [resolvable:$true] %s592
          %598 = dma.hbm_to_vmem [thread:$0]  %s11, 512, %s593, [#allocation9], 128, 128, 8
        $region56: #{tpu_custom_call.1} parent=11 // pred_fallthru
          _
        // Predicated region
        $region57: #{tpu_custom_call.1} parent=11 // pred_check
          %p599 = pneg %p311
        $region58: #{tpu_custom_call.1} parent=11 // pred_check_branch
          %601 = sbr.rel (%p599) target = $region60
        $region59: #{tpu_custom_call.1} parent=11 // pred_region
          _
        $region60: #{tpu_custom_call.1} parent=11 // pred_fallthru
          _
        // Predicated region
        $region61: #{tpu_custom_call.1} parent=11 // pred_check
          %p602 = pneg %p332
        $region62: #{tpu_custom_call.1} parent=11 // pred_check_branch
          %604 = sbr.rel (%p602) target = $region64
        $region63: #{tpu_custom_call.1} parent=11 // pred_region
          _
        $region64: #{tpu_custom_call.1} parent=11 // pred_fallthru
          _
        // Predicated region
        $region65: #{tpu_custom_call.1} parent=11 // pred_check
          %p605 = pneg %p353
        $region66: #{tpu_custom_call.1} parent=11 // pred_check_branch
          %607 = sbr.rel (%p605) target = $region68
        $region67: #{tpu_custom_call.1} parent=11 // pred_region
          _
        $region68: #{tpu_custom_call.1} parent=11 // pred_fallthru
          _
        // Predicated region
        $region69: #{tpu_custom_call.1} parent=11 // pred_check
          %p608 = pneg %p374
        $region70: #{tpu_custom_call.1} parent=11 // pred_check_branch
          %610 = sbr.rel (%p608) target = $region72
        $region71: #{tpu_custom_call.1} parent=11 // pred_region
          _
        $region72: #{tpu_custom_call.1} parent=11 // pred_fallthru
          _
        // Predicated region
        $region73: #{tpu_custom_call.1} parent=11 // pred_check
          %p611 = pneg %p395
        $region74: #{tpu_custom_call.1} parent=11 // pred_check_branch
          %613 = sbr.rel (%p611) target = $region76
        $region75: #{tpu_custom_call.1} parent=11 // pred_region
          _
        $region76: #{tpu_custom_call.1} parent=11 // pred_fallthru
          _
        // Predicated region
        $region77: #{tpu_custom_call.1} parent=11 // pred_check
          %p614 = pneg %p416
        $region78: #{tpu_custom_call.1} parent=11 // pred_check_branch
          %616 = sbr.rel (%p614) target = $region80
        $region79: #{tpu_custom_call.1} parent=11 // pred_region
          _
        $region80: #{tpu_custom_call.1} parent=11 // pred_fallthru
          _
        // Predicated region
        $region81: #{tpu_custom_call.1} parent=11 // pred_check
          %p617 = pneg %p437
        $region82: #{tpu_custom_call.1} parent=11 // pred_check_branch
          %619 = sbr.rel (%p617) target = $region84
        $region83: #{tpu_custom_call.1} parent=11 // pred_region
          _
        $region84: #{tpu_custom_call.1} parent=11 // pred_fallthru
          _
        // Predicated region
        $region85: #{tpu_custom_call.1} parent=11 // pred_check
          %p620 = pneg %p458
        $region86: #{tpu_custom_call.1} parent=11 // pred_check_branch
          %622 = sbr.rel (%p620) target = $region88
        $region87: #{tpu_custom_call.1} parent=11 // pred_region
          _
        $region88: #{tpu_custom_call.1} parent=11 // pred_fallthru
          _
        // Predicated region
        $region89: #{tpu_custom_call.1} parent=11 // pred_check
          %p623 = pneg %p479
        $region90: #{tpu_custom_call.1} parent=11 // pred_check_branch
          %625 = sbr.rel (%p623) target = $region92
        $region91: #{tpu_custom_call.1} parent=11 // pred_region
          _
        $region92: #{tpu_custom_call.1} parent=11 // pred_fallthru
          _
      $region12: #{tpu_custom_call.1} parent=5 // pred_fallthru
        _
      %p626 = scmp.lt.s32.totalorder %s33, 2
      // Predicated region
      $region93: #{tpu_custom_call.1} parent=5 // pred_check
        %p627 = pneg %p626
      $region94: #{tpu_custom_call.1} parent=5 // pred_check_branch
        %629 = sbr.rel (%p627) target = $region96
      $region95: #{tpu_custom_call.1} parent=5 // pred_region
        // Predicated region
        $region97: #{tpu_custom_call.1} parent=95 // pred_check
          %p630 = pneg %p53
        $region98: #{tpu_custom_call.1} parent=95 // pred_check_branch
          %632 = sbr.rel (%p630) target = $region100
        $region99: #{tpu_custom_call.1} parent=95 // pred_region
          %p633 = scmp.lt.s32.totalorder %s33, 1
          %s634 = scalar_select %p633, %s33, 1
          %s635 = smul.addr %s634, 2
          %s636 = smul.addr %s635, 8
          %s637 = scalar_lea.vmem %s0, %s636
        $region100: #{tpu_custom_call.1} parent=95 // pred_fallthru
          _
      $region96: #{tpu_custom_call.1} parent=5 // pred_fallthru
        _
      %p638 = scmp.le.s32.totalorder 1, %s33
      %p639 = scmp.lt.s32.totalorder %s33, 3
      %p640 = pnand %p638, %p639
      %p641 = pneg %p640
      // Predicated region
      $region101: #{tpu_custom_call.1} parent=5 // pred_check
        _
      $region102: #{tpu_custom_call.1} parent=5 // pred_check_branch
        %643 = sbr.rel (%p640) target = $region104
      $region103: #{tpu_custom_call.1} parent=5 // pred_region
        %s644 = ssub.s32 %s33, 1
        // Predicated region
        $region105: #{tpu_custom_call.1} parent=103 // pred_check
          %p645 = pneg %p164
        $region106: #{tpu_custom_call.1} parent=103 // pred_check_branch
          %647 = sbr.rel (%p645) target = $region108
        $region107: #{tpu_custom_call.1} parent=103 // pred_region
          %648 = dma.done [#allocation3], 512
        $region108: #{tpu_custom_call.1} parent=103 // pred_fallthru
          _
        // Predicated region
        $region109: #{tpu_custom_call.1} parent=103 // pred_check
          %p649 = pneg %p185
        $region110: #{tpu_custom_call.1} parent=103 // pred_check_branch
          %651 = sbr.rel (%p649) target = $region112
        $region111: #{tpu_custom_call.1} parent=103 // pred_region
          %652 = dma.done [#allocation6], 16
        $region112: #{tpu_custom_call.1} parent=103 // pred_fallthru
          _
        // Predicated region
        $region113: #{tpu_custom_call.1} parent=103 // pred_check
          %p653 = pneg %p206
        $region114: #{tpu_custom_call.1} parent=103 // pred_check_branch
          %655 = sbr.rel (%p653) target = $region116
        $region115: #{tpu_custom_call.1} parent=103 // pred_region
          %656 = dma.done [#allocation6], 512
        $region116: #{tpu_custom_call.1} parent=103 // pred_fallthru
          _
        // Predicated region
        $region117: #{tpu_custom_call.1} parent=103 // pred_check
          %p657 = pneg %p227
        $region118: #{tpu_custom_call.1} parent=103 // pred_check_branch
          %659 = sbr.rel (%p657) target = $region120
        $region119: #{tpu_custom_call.1} parent=103 // pred_region
          %660 = dma.done [#allocation9], 16
        $region120: #{tpu_custom_call.1} parent=103 // pred_fallthru
          _
        // Predicated region
        $region121: #{tpu_custom_call.1} parent=103 // pred_check
          %p661 = pneg %p290
        $region122: #{tpu_custom_call.1} parent=103 // pred_check_branch
          %663 = sbr.rel (%p661) target = $region124
        $region123: #{tpu_custom_call.1} parent=103 // pred_region
          %664 = dma.done [#allocation9], 512
        $region124: #{tpu_custom_call.1} parent=103 // pred_fallthru
          _
        %p665 = scmp.lt.s32.totalorder %s38, 1
        %s666 = scalar_select %p665, %s38, 1
        %s667 = smul.addr %s666, 2
        %s668 = smul.addr %s667, 8
        %s669 = scalar_lea.vmem %s0, %s668
        %p670 = pneg %p59
        %p671 = pneg %p56
        %p672 = pneg %p80
        %p673 = pneg %p77
        %p674 = pneg %p101
        %p675 = pneg %p98
        %p676 = pneg %p122
        %p677 = pneg %p119
        %p678 = pneg %p143
        %p679 = pneg %p140
        %p680 = pneg %p164
        %p681 = pneg %p161
        %p682 = pneg %p185
        %p683 = pneg %p182
        %p684 = pneg %p206
        %p685 = pneg %p203
        %p686 = pneg %p227
        %p687 = pneg %p224
        %p688 = pneg %p248
        %p689 = pneg %p245
        %p690 = pneg %p269
        %p691 = pneg %p266
        %p692 = pneg %p290
        %p693 = pneg %p287
        %p694 = pneg %p311
        %p695 = pneg %p308
        %p696 = pneg %p332
        %p697 = pneg %p329
        %p698 = pneg %p353
        %p699 = pneg %p350
        %p700 = pneg %p374
        %p701 = pneg %p371
        %p702 = pneg %p395
        %p703 = pneg %p392
        %p704 = pneg %p416
        %p705 = pneg %p413
        %p706 = pneg %p437
        %p707 = pneg %p434
        %p708 = pneg %p458
        %p709 = pneg %p455
        %p710 = pneg %p479
        %p711 = pneg %p476
        %p712 = pneg %p505
        %p713 = pneg %p502
        %s714 = sand.u32 %s492, 1
        %s715 = scalar_lea.sflag [#allocation4], %s714
        %s716 = sand.u32 %s492, 1
        %s717 = smul.addr %s716, 16
        %s718 = scalar_lea.vmem [#allocation11], %s717
        %p719 = scmp.lt.s32.totalorder %s38, 1
        %s720 = scalar_select %p719, %s38, 1
        %s721 = smul.addr %s720, 2
        %s722 = smul.addr %s721, 8
        %s723 = scalar_lea.vmem %s0, %s722
        %v724 = vld [vmem:[%s723] sm:$0xff]
        %v725 = vld [vmem:[%s723 + $0x8] sm:$0xff]
        %v726 = vld [vmem:[%s1] sm:$0xff]
        %v727 = vld [vmem:[%s1 + $0x8] sm:$0xff]
        %v728 = vld [vmem:[%s1 + $0x10] sm:$0xff]
        %v729 = vld [vmem:[%s1 + $0x18] sm:$0xff]
        %v730 = vld [vmem:[%s2] sm:$0x1]
        %v732 = vlaneseq
        %v733 = vshrl.u32 %v732, 7
        %v734 = vsub.s32 0, %v733
        %v735 = vrot.slane %v730, %v734
        %vm737 = vcmask 261120
        %v739 = vsel %vm737, %v724, 0
        %v742 = vsel %vm737, %v725, 0
        %v745 = vsel %vm737, %v726, 0
        %v748 = vsel %vm737, %v727, 0
        %v751 = vsel %vm737, %v728, 0
        %v754 = vsel %vm737, %v729, 0
        %756 = vmatprep.subr.mxu0 0.0
        %757 = vmatpush1.xpose.msra.mxu0 %v745
        %758 = vmatprep.subr.mxu0 0.0
        %759 = vmatpush1.xpose.msra.mxu0 %v748
        %760 = vmatprep.subr.mxu0 0.0
        %761 = vmatpush1.xpose.msra.mxu0 %v751
        %762 = vmatprep.subr.mxu0 0.0
        %763 = vmatpush1.xpose.msra.mxu0 %v754
        %764 = vmatprep.subr.mxu0 0.0
        %765 = vmatpush1.xpose.msra.mxu0 0.0
        %766 = vmatprep.subr.mxu0 0.0
        %767 = vmatpush1.xpose.msra.mxu0 0.0
        %768 = vmatprep.subr.mxu0 0.0
        %769 = vmatpush1.xpose.msra.mxu0 0.0
        %770 = vmatprep.subr.mxu0 0.0
        %771 = vmatpush1.xpose.msra.mxu0 0.0
        %772 = vmatprep.subr.mxu0 0.0
        %773 = vmatpush1.xpose.msra.mxu0 0.0
        %774 = vmatprep.subr.mxu0 0.0
        %775 = vmatpush1.xpose.msra.mxu0 0.0
        %776 = vmatprep.subr.mxu0 0.0
        %777 = vmatpush1.xpose.msra.mxu0 0.0
        %778 = vmatprep.subr.mxu0 0.0
        %779 = vmatpush1.xpose.msra.mxu0 0.0
        %780 = vmatprep.subr.mxu0 0.0
        %781 = vmatpush1.xpose.msra.mxu0 0.0
        %782 = vmatprep.subr.mxu0 0.0
        %783 = vmatpush1.xpose.msra.mxu0 0.0
        %784 = vmatprep.subr.mxu0 0.0
        %785 = vmatpush1.xpose.msra.mxu0 0.0
        %786 = vmatprep.subr.mxu0 0.0
        %787 = vmatpush1.xpose.msra.mxu0 0.0
        %788 = vmatprep.subr.mxu0 0.0
        %789 = vmatpush1.xpose.msra.mxu0 0.0
        %790 = vmatprep.subr.mxu0 0.0
        %791 = vmatpush1.xpose.msra.mxu0 0.0
        %792 = vmatprep.subr.mxu0 0.0
        %793 = vmatpush1.xpose.msra.mxu0 0.0
        %794 = vmatprep.subr.mxu0 0.0
        %795 = vmatpush1.xpose.msra.mxu0 0.0
        %796 = vmatprep.subr.mxu0 0.0
        %797 = vmatpush1.xpose.msra.mxu0 0.0
        %798 = vmatprep.subr.mxu0 0.0
        %799 = vmatpush1.xpose.msra.mxu0 0.0
        %800 = vmatprep.subr.mxu0 0.0
        %801 = vmatpush1.xpose.msra.mxu0 0.0
        %802 = vmatprep.subr.mxu0 0.0
        %803 = vmatpush1.xpose.msra.mxu0 0.0
        %804 = vmatprep.subr.mxu0 0.0
        %805 = vmatpush1.xpose.msra.mxu0 0.0
        %806 = vmatprep.subr.mxu0 0.0
        %807 = vmatpush1.xpose.msra.mxu0 0.0
        %808 = vmatprep.subr.mxu0 0.0
        %809 = vmatpush1.xpose.msra.mxu0 0.0
        %810 = vmatprep.subr.mxu0 0.0
        %811 = vmatpush1.xpose.msra.mxu0 0.0
        %812 = vmatprep.subr.mxu0 0.0
        %813 = vmatpush1.xpose.msra.mxu0 0.0
        %814 = vmatprep.subr.mxu0 0.0
        %815 = vmatpush1.xpose.msra.mxu0 0.0
        %816 = vmatprep.subr.mxu0 0.0
        %817 = vmatpush1.xpose.msra.mxu0 0.0
        %818 = vmatprep.subr.mxu0 0.0
        %819 = vmatpush1.xpose.msra.mxu0 0.0
        %820 = vmatprep.mubr.f32.mxu0 0.0
        %821 = vmatmul.mubr.f32.gmra.mrb[0].mxu0 %v739
        %v822 = vpop.f32.mrb[0].mxu0
        %v823 = vadd.f32 %v735, %v822
        %v824 = vpop.f32.mrb[0].mxu0
        %825 = vmatprep.mubr.f32.mxu0 0.0
        %826 = vmatmul.mubr.f32.gmra.mrb[0].mxu0 %v742
        %v827 = vpop.f32.mrb[0].mxu0
        %v828 = vadd.f32 %v735, %v827
        %v829 = vpop.f32.mrb[0].mxu0
        %830 = vdwg.mxu0
        %v831 = vld [vmem:[%s3] sm:$0xff]
        %v832 = vld [vmem:[%s3 + $0x8] sm:$0xff]
        %v833 = vld [vmem:[%s3 + $0x10] sm:$0xff]
        %v834 = vld [vmem:[%s3 + $0x18] sm:$0xff]
        %v835 = vld [vmem:[%s4] sm:$0x1]
        %v837 = vlaneseq
        %v838 = vshrl.u32 %v837, 7
        %v839 = vsub.s32 0, %v838
        %v840 = vrot.slane %v835, %v839
        %v843 = vsel %vm737, %v831, 0
        %v846 = vsel %vm737, %v832, 0
        %v849 = vsel %vm737, %v833, 0
        %v852 = vsel %vm737, %v834, 0
        %854 = vmatprep.subr.mxu0 0.0
        %855 = vmatpush1.xpose.msra.mxu0 %v843
        %856 = vmatprep.subr.mxu0 0.0
        %857 = vmatpush1.xpose.msra.mxu0 %v846
        %858 = vmatprep.subr.mxu0 0.0
        %859 = vmatpush1.xpose.msra.mxu0 %v849
        %860 = vmatprep.subr.mxu0 0.0
        %861 = vmatpush1.xpose.msra.mxu0 %v852
        %862 = vmatprep.subr.mxu0 0.0
        %863 = vmatpush1.xpose.msra.mxu0 0.0
        %864 = vmatprep.subr.mxu0 0.0
        %865 = vmatpush1.xpose.msra.mxu0 0.0
        %866 = vmatprep.subr.mxu0 0.0
        %867 = vmatpush1.xpose.msra.mxu0 0.0
        %868 = vmatprep.subr.mxu0 0.0
        %869 = vmatpush1.xpose.msra.mxu0 0.0
        %870 = vmatprep.subr.mxu0 0.0
        %871 = vmatpush1.xpose.msra.mxu0 0.0
        %872 = vmatprep.subr.mxu0 0.0
        %873 = vmatpush1.xpose.msra.mxu0 0.0
        %874 = vmatprep.subr.mxu0 0.0
        %875 = vmatpush1.xpose.msra.mxu0 0.0
        %876 = vmatprep.subr.mxu0 0.0
        %877 = vmatpush1.xpose.msra.mxu0 0.0
        %878 = vmatprep.subr.mxu0 0.0
        %879 = vmatpush1.xpose.msra.mxu0 0.0
        %880 = vmatprep.subr.mxu0 0.0
        %881 = vmatpush1.xpose.msra.mxu0 0.0
        %882 = vmatprep.subr.mxu0 0.0
        %883 = vmatpush1.xpose.msra.mxu0 0.0
        %884 = vmatprep.subr.mxu0 0.0
        %885 = vmatpush1.xpose.msra.mxu0 0.0
        %886 = vmatprep.subr.mxu0 0.0
        %887 = vmatpush1.xpose.msra.mxu0 0.0
        %888 = vmatprep.subr.mxu0 0.0
        %889 = vmatpush1.xpose.msra.mxu0 0.0
        %890 = vmatprep.subr.mxu0 0.0
        %891 = vmatpush1.xpose.msra.mxu0 0.0
        %892 = vmatprep.subr.mxu0 0.0
        %893 = vmatpush1.xpose.msra.mxu0 0.0
        %894 = vmatprep.subr.mxu0 0.0
        %895 = vmatpush1.xpose.msra.mxu0 0.0
        %896 = vmatprep.subr.mxu0 0.0
        %897 = vmatpush1.xpose.msra.mxu0 0.0
        %898 = vmatprep.subr.mxu0 0.0
        %899 = vmatpush1.xpose.msra.mxu0 0.0
        %900 = vmatprep.subr.mxu0 0.0
        %901 = vmatpush1.xpose.msra.mxu0 0.0
        %902 = vmatprep.subr.mxu0 0.0
        %903 = vmatpush1.xpose.msra.mxu0 0.0
        %904 = vmatprep.subr.mxu0 0.0
        %905 = vmatpush1.xpose.msra.mxu0 0.0
        %906 = vmatprep.subr.mxu0 0.0
        %907 = vmatpush1.xpose.msra.mxu0 0.0
        %908 = vmatprep.subr.mxu0 0.0
        %909 = vmatpush1.xpose.msra.mxu0 0.0
        %910 = vmatprep.subr.mxu0 0.0
        %911 = vmatpush1.xpose.msra.mxu0 0.0
        %912 = vmatprep.subr.mxu0 0.0
        %913 = vmatpush1.xpose.msra.mxu0 0.0
        %914 = vmatprep.subr.mxu0 0.0
        %915 = vmatpush1.xpose.msra.mxu0 0.0
        %916 = vmatprep.subr.mxu0 0.0
        %917 = vmatpush1.xpose.msra.mxu0 0.0
        %918 = vmatprep.mubr.f32.mxu0 0.0
        %919 = vmatmul.mubr.f32.gmra.mrb[0].mxu0 %v739
        %v920 = vpop.f32.mrb[0].mxu0
        %v921 = vadd.f32 %v840, %v920
        %v922 = vpop.f32.mrb[0].mxu0
        %923 = vmatprep.mubr.f32.mxu0 0.0
        %924 = vmatmul.mubr.f32.gmra.mrb[0].mxu0 %v742
        %v925 = vpop.f32.mrb[0].mxu0
        %v926 = vadd.f32 %v840, %v925
        %v927 = vpop.f32.mrb[0].mxu0
        %928 = vdwg.mxu0
        %v929 = vld [vmem:[#allocation2] sm:$0xff]
        %v930 = vld [vmem:[#allocation2 + $0x8] sm:$0xff]
        %v931 = vld [vmem:[#allocation2 + $0x10] sm:$0xff]
        %v932 = vld [vmem:[#allocation2 + $0x18] sm:$0xff]
        %v933 = vld [vmem:[#allocation5] sm:$0x1]
        %v935 = vlaneseq
        %v936 = vshrl.u32 %v935, 7
        %v937 = vsub.s32 0, %v936
        %v938 = vrot.slane %v933, %v937
        %v941 = vsel %vm737, %v929, 0
        %v944 = vsel %vm737, %v930, 0
        %v947 = vsel %vm737, %v931, 0
        %v950 = vsel %vm737, %v932, 0
        %952 = vmatprep.subr.mxu0 0.0
        %953 = vmatpush1.xpose.msra.mxu0 %v941
        %954 = vmatprep.subr.mxu0 0.0
        %955 = vmatpush1.xpose.msra.mxu0 %v944
        %956 = vmatprep.subr.mxu0 0.0
        %957 = vmatpush1.xpose.msra.mxu0 %v947
        %958 = vmatprep.subr.mxu0 0.0
        %959 = vmatpush1.xpose.msra.mxu0 %v950
        %960 = vmatprep.subr.mxu0 0.0
        %961 = vmatpush1.xpose.msra.mxu0 0.0
        %962 = vmatprep.subr.mxu0 0.0
        %963 = vmatpush1.xpose.msra.mxu0 0.0
        %964 = vmatprep.subr.mxu0 0.0
        %965 = vmatpush1.xpose.msra.mxu0 0.0
        %966 = vmatprep.subr.mxu0 0.0
        %967 = vmatpush1.xpose.msra.mxu0 0.0
        %968 = vmatprep.subr.mxu0 0.0
        %969 = vmatpush1.xpose.msra.mxu0 0.0
        %970 = vmatprep.subr.mxu0 0.0
        %971 = vmatpush1.xpose.msra.mxu0 0.0
        %972 = vmatprep.subr.mxu0 0.0
        %973 = vmatpush1.xpose.msra.mxu0 0.0
        %974 = vmatprep.subr.mxu0 0.0
        %975 = vmatpush1.xpose.msra.mxu0 0.0
        %976 = vmatprep.subr.mxu0 0.0
        %977 = vmatpush1.xpose.msra.mxu0 0.0
        %978 = vmatprep.subr.mxu0 0.0
        %979 = vmatpush1.xpose.msra.mxu0 0.0
        %980 = vmatprep.subr.mxu0 0.0
        %981 = vmatpush1.xpose.msra.mxu0 0.0
        %982 = vmatprep.subr.mxu0 0.0
        %983 = vmatpush1.xpose.msra.mxu0 0.0
        %984 = vmatprep.subr.mxu0 0.0
        %985 = vmatpush1.xpose.msra.mxu0 0.0
        %986 = vmatprep.subr.mxu0 0.0
        %987 = vmatpush1.xpose.msra.mxu0 0.0
        %988 = vmatprep.subr.mxu0 0.0
        %989 = vmatpush1.xpose.msra.mxu0 0.0
        %990 = vmatprep.subr.mxu0 0.0
        %991 = vmatpush1.xpose.msra.mxu0 0.0
        %992 = vmatprep.subr.mxu0 0.0
        %993 = vmatpush1.xpose.msra.mxu0 0.0
        %994 = vmatprep.subr.mxu0 0.0
        %995 = vmatpush1.xpose.msra.mxu0 0.0
        %996 = vmatprep.subr.mxu0 0.0
        %997 = vmatpush1.xpose.msra.mxu0 0.0
        %998 = vmatprep.subr.mxu0 0.0
        %999 = vmatpush1.xpose.msra.mxu0 0.0
        %1000 = vmatprep.subr.mxu0 0.0
        %1001 = vmatpush1.xpose.msra.mxu0 0.0
        %1002 = vmatprep.subr.mxu0 0.0
        %1003 = vmatpush1.xpose.msra.mxu0 0.0
        %1004 = vmatprep.subr.mxu0 0.0
        %1005 = vmatpush1.xpose.msra.mxu0 0.0
        %1006 = vmatprep.subr.mxu0 0.0
        %1007 = vmatpush1.xpose.msra.mxu0 0.0
        %1008 = vmatprep.subr.mxu0 0.0
        %1009 = vmatpush1.xpose.msra.mxu0 0.0
        %1010 = vmatprep.subr.mxu0 0.0
        %1011 = vmatpush1.xpose.msra.mxu0 0.0
        %1012 = vmatprep.subr.mxu0 0.0
        %1013 = vmatpush1.xpose.msra.mxu0 0.0
        %1014 = vmatprep.subr.mxu0 0.0
        %1015 = vmatpush1.xpose.msra.mxu0 0.0
        %1016 = vmatprep.mubr.f32.mxu0 0.0
        %1017 = vmatmul.mubr.f32.gmra.mrb[0].mxu0 %v739
        %v1018 = vpop.f32.mrb[0].mxu0
        %v1019 = vadd.f32 %v938, %v1018
        %v1020 = vpop.f32.mrb[0].mxu0
        %1021 = vmatprep.mubr.f32.mxu0 0.0
        %1022 = vmatmul.mubr.f32.gmra.mrb[0].mxu0 %v742
        %v1023 = vpop.f32.mrb[0].mxu0
        %v1024 = vadd.f32 %v938, %v1023
        %v1025 = vpop.f32.mrb[0].mxu0
        %1026 = vdwg.mxu0
        %v1027 = vld [vmem:[#allocation8] sm:$0x1]
        %vm1028 = vcmask 64512
        %v1030 = vsel %vm1028, %v823, 0
        %v1033 = vsel %vm1028, %v828, 0
        %v1036 = vsel %vm1028, %v921, 0
        %v1039 = vsel %vm1028, %v926, 0
        %1041 = vmatprep.subr.mxu0 0.0
        %1042 = vmatpush1.xpose.msra.mxu0 %v1036
        %1043 = vmatprep.subr.mxu0 0.0
        %1044 = vmatpush1.xpose.msra.mxu0 %v1039
        %1045 = vmatprep.subr.mxu0 0.0
        %1046 = vmatpush1.xpose.msra.mxu0 0.0
        %1047 = vmatprep.subr.mxu0 0.0
        %1048 = vmatpush1.xpose.msra.mxu0 0.0
        %1049 = vmatprep.subr.mxu0 0.0
        %1050 = vmatpush1.xpose.msra.mxu0 0.0
        %1051 = vmatprep.subr.mxu0 0.0
        %1052 = vmatpush1.xpose.msra.mxu0 0.0
        %1053 = vmatprep.subr.mxu0 0.0
        %1054 = vmatpush1.xpose.msra.mxu0 0.0
        %1055 = vmatprep.subr.mxu0 0.0
        %1056 = vmatpush1.xpose.msra.mxu0 0.0
        %1057 = vmatprep.subr.mxu0 0.0
        %1058 = vmatpush1.xpose.msra.mxu0 0.0
        %1059 = vmatprep.subr.mxu0 0.0
        %1060 = vmatpush1.xpose.msra.mxu0 0.0
        %1061 = vmatprep.subr.mxu0 0.0
        %1062 = vmatpush1.xpose.msra.mxu0 0.0
        %1063 = vmatprep.subr.mxu0 0.0
        %1064 = vmatpush1.xpose.msra.mxu0 0.0
        %1065 = vmatprep.subr.mxu0 0.0
        %1066 = vmatpush1.xpose.msra.mxu0 0.0
        %1067 = vmatprep.subr.mxu0 0.0
        %1068 = vmatpush1.xpose.msra.mxu0 0.0
        %1069 = vmatprep.subr.mxu0 0.0
        %1070 = vmatpush1.xpose.msra.mxu0 0.0
        %1071 = vmatprep.subr.mxu0 0.0
        %1072 = vmatpush1.xpose.msra.mxu0 0.0
        %1073 = vmatprep.subr.mxu0 0.0
        %1074 = vmatpush1.xpose.msra.mxu0 0.0
        %1075 = vmatprep.subr.mxu0 0.0
        %1076 = vmatpush1.xpose.msra.mxu0 0.0
        %1077 = vmatprep.subr.mxu0 0.0
        %1078 = vmatpush1.xpose.msra.mxu0 0.0
        %1079 = vmatprep.subr.mxu0 0.0
        %1080 = vmatpush1.xpose.msra.mxu0 0.0
        %1081 = vmatprep.subr.mxu0 0.0
        %1082 = vmatpush1.xpose.msra.mxu0 0.0
        %1083 = vmatprep.subr.mxu0 0.0
        %1084 = vmatpush1.xpose.msra.mxu0 0.0
        %1085 = vmatprep.subr.mxu0 0.0
        %1086 = vmatpush1.xpose.msra.mxu0 0.0
        %1087 = vmatprep.subr.mxu0 0.0
        %1088 = vmatpush1.xpose.msra.mxu0 0.0
        %1089 = vmatprep.subr.mxu0 0.0
        %1090 = vmatpush1.xpose.msra.mxu0 0.0
        %1091 = vmatprep.subr.mxu0 0.0
        %1092 = vmatpush1.xpose.msra.mxu0 0.0
        %1093 = vmatprep.subr.mxu0 0.0
        %1094 = vmatpush1.xpose.msra.mxu0 0.0
        %1095 = vmatprep.subr.mxu0 0.0
        %1096 = vmatpush1.xpose.msra.mxu0 0.0
        %1097 = vmatprep.subr.mxu0 0.0
        %1098 = vmatpush1.xpose.msra.mxu0 0.0
        %1099 = vmatprep.subr.mxu0 0.0
        %1100 = vmatpush1.xpose.msra.mxu0 0.0
        %1101 = vmatprep.subr.mxu0 0.0
        %1102 = vmatpush1.xpose.msra.mxu0 0.0
        %1103 = vmatprep.subr.mxu0 0.0
        %1104 = vmatpush1.xpose.msra.mxu0 0.0
        %1105 = vmatprep.mubr.f32.mxu0 0.0
        %1106 = vmatmul.mubr.f32.gmra.mrb[0].mxu0 %v1030
        %v1107 = vpop.f32.mrb[0].mxu0
        %v1108 = vadd.f32 0.0, %v1107
        %v1109 = vpop.f32.mrb[0].mxu0
        %1110 = vmatprep.mubr.f32.mxu0 0.0
        %1111 = vmatmul.mubr.f32.gmra.mrb[0].mxu0 %v1033
        %v1112 = vpop.f32.mrb[0].mxu0
        %v1113 = vadd.f32 0.0, %v1112
        %v1114 = vpop.f32.mrb[0].mxu0
        %1115 = vdwg.mxu0
        %v1116 = vmul.f32 %v1108, 0.35355338
        %v1117 = vmul.f32 %v1113, 0.35355338
        %vm1118 = vcmask 130048
        %v1119 = vsel %vm1118, %v1116, -inf
        %1120 = vmax.xlane.f32.xlu0 %v1119
        %v1121 = vpop.xlane.xlu0 %1120
        %v1122 = vsel %vm1118, %v1117, -inf
        %1123 = vmax.xlane.f32.xlu0 %v1122
        %v1124 = vpop.xlane.xlu0 %1123
        %v1125 = vsub.f32 %v1116, %v1121
        %v1126 = vsub.f32 %v1117, %v1124
        %v1127 = vmul.f32 %v1125, 1.442695
        %v1128 = vpow.pop %v1127
        %v1129 = vmul.f32 %v1126, 1.442695
        %v1130 = vpow.pop %v1129
        %v1131 = vsel %vm1118, %v1128, 0.0
        %1132 = vadd.xlane.f32.xlu0 %v1131
        %v1133 = vpop.xlane.xlu0 %1132
        %v1134 = vsel %vm1118, %v1130, 0.0
        %1135 = vadd.xlane.f32.xlu0 %v1134
        %v1136 = vpop.xlane.xlu0 %1135
        %v1137 = vrcp.pop %v1133
        %v1138 = vmul.f32 %v1128, %v1137
        %v1139 = vrcp.pop %v1136
        %v1140 = vmul.f32 %v1130, %v1139
        %v1142 = vsel %vm1118, %v1138, 0
        %v1145 = vsel %vm1118, %v1140, 0
        %1147 = vmatprep.subr.mxu0 0.0
        %1148 = vmatpush1.msra.mxu0 %v1019
        %1149 = vmatprep.subr.mxu0 0.0
        %1150 = vmatpush1.msra.mxu0 %v1024
        %1151 = vmatprep.subr.mxu0 0.0
        %1152 = vmatpush1.msra.mxu0 0.0
        %1153 = vmatprep.subr.mxu0 0.0
        %1154 = vmatpush1.msra.mxu0 0.0
        %1155 = vmatprep.subr.mxu0 0.0
        %1156 = vmatpush1.msra.mxu0 0.0
        %1157 = vmatprep.subr.mxu0 0.0
        %1158 = vmatpush1.msra.mxu0 0.0
        %1159 = vmatprep.subr.mxu0 0.0
        %1160 = vmatpush1.msra.mxu0 0.0
        %1161 = vmatprep.subr.mxu0 0.0
        %1162 = vmatpush1.msra.mxu0 0.0
        %1163 = vmatprep.subr.mxu0 0.0
        %1164 = vmatpush1.msra.mxu0 0.0
        %1165 = vmatprep.subr.mxu0 0.0
        %1166 = vmatpush1.msra.mxu0 0.0
        %1167 = vmatprep.subr.mxu0 0.0
        %1168 = vmatpush1.msra.mxu0 0.0
        %1169 = vmatprep.subr.mxu0 0.0
        %1170 = vmatpush1.msra.mxu0 0.0
        %1171 = vmatprep.subr.mxu0 0.0
        %1172 = vmatpush1.msra.mxu0 0.0
        %1173 = vmatprep.subr.mxu0 0.0
        %1174 = vmatpush1.msra.mxu0 0.0
        %1175 = vmatprep.subr.mxu0 0.0
        %1176 = vmatpush1.msra.mxu0 0.0
        %1177 = vmatprep.subr.mxu0 0.0
        %1178 = vmatpush1.msra.mxu0 0.0
        %1179 = vmatprep.subr.mxu0 0.0
        %1180 = vmatpush1.msra.mxu0 0.0
        %1181 = vmatprep.subr.mxu0 0.0
        %1182 = vmatpush1.msra.mxu0 0.0
        %1183 = vmatprep.subr.mxu0 0.0
        %1184 = vmatpush1.msra.mxu0 0.0
        %1185 = vmatprep.subr.mxu0 0.0
        %1186 = vmatpush1.msra.mxu0 0.0
        %1187 = vmatprep.subr.mxu0 0.0
        %1188 = vmatpush1.msra.mxu0 0.0
        %1189 = vmatprep.subr.mxu0 0.0
        %1190 = vmatpush1.msra.mxu0 0.0
        %1191 = vmatprep.subr.mxu0 0.0
        %1192 = vmatpush1.msra.mxu0 0.0
        %1193 = vmatprep.subr.mxu0 0.0
        %1194 = vmatpush1.msra.mxu0 0.0
        %1195 = vmatprep.subr.mxu0 0.0
        %1196 = vmatpush1.msra.mxu0 0.0
        %1197 = vmatprep.subr.mxu0 0.0
        %1198 = vmatpush1.msra.mxu0 0.0
        %1199 = vmatprep.subr.mxu0 0.0
        %1200 = vmatpush1.msra.mxu0 0.0
        %1201 = vmatprep.subr.mxu0 0.0
        %1202 = vmatpush1.msra.mxu0 0.0
        %1203 = vmatprep.subr.mxu0 0.0
        %1204 = vmatpush1.msra.mxu0 0.0
        %1205 = vmatprep.subr.mxu0 0.0
        %1206 = vmatpush1.msra.mxu0 0.0
        %1207 = vmatprep.subr.mxu0 0.0
        %1208 = vmatpush1.msra.mxu0 0.0
        %1209 = vmatprep.subr.mxu0 0.0
        %1210 = vmatpush1.msra.mxu0 0.0
        %1211 = vmatprep.mubr.f32.mxu0 0.0
        %1212 = vmatmul.mubr.f32.gmra.mrb[0].mxu0 %v1142
        %v1213 = vpop.f32.mrb[0].mxu0
        %v1214 = vadd.f32 0.0, %v1213
        %v1215 = vpop.f32.mrb[0].mxu0
        %1216 = vmatprep.mubr.f32.mxu0 0.0
        %1217 = vmatmul.mubr.f32.gmra.mrb[0].mxu0 %v1145
        %v1218 = vpop.f32.mrb[0].mxu0
        %v1219 = vadd.f32 0.0, %v1218
        %v1220 = vpop.f32.mrb[0].mxu0
        %1221 = vdwg.mxu0
        %v1222 = vld [vmem:[#allocation7] sm:$0xff]
        %v1223 = vld [vmem:[#allocation7 + $0x8] sm:$0xff]
        %v1224 = vld [vmem:[#allocation7 + $0x10] sm:$0xff]
        %v1225 = vld [vmem:[#allocation7 + $0x18] sm:$0xff]
        %v1227 = vsel %vm1028, %v1214, 0
        %v1230 = vsel %vm1028, %v1219, 0
        %v1233 = vsel %vm1028, %v1222, 0
        %v1236 = vsel %vm1028, %v1223, 0
        %v1239 = vsel %vm1028, %v1224, 0
        %v1242 = vsel %vm1028, %v1225, 0
        %1244 = vmatprep.subr.mxu0 0.0
        %1245 = vmatpush1.xpose.msra.mxu0 %v1233
        %1246 = vmatprep.subr.mxu0 0.0
        %1247 = vmatpush1.xpose.msra.mxu0 %v1236
        %1248 = vmatprep.subr.mxu0 0.0
        %1249 = vmatpush1.xpose.msra.mxu0 %v1239
        %1250 = vmatprep.subr.mxu0 0.0
        %1251 = vmatpush1.xpose.msra.mxu0 %v1242
        %1252 = vmatprep.subr.mxu0 0.0
        %1253 = vmatpush1.xpose.msra.mxu0 0.0
        %1254 = vmatprep.subr.mxu0 0.0
        %1255 = vmatpush1.xpose.msra.mxu0 0.0
        %1256 = vmatprep.subr.mxu0 0.0
        %1257 = vmatpush1.xpose.msra.mxu0 0.0
        %1258 = vmatprep.subr.mxu0 0.0
        %1259 = vmatpush1.xpose.msra.mxu0 0.0
        %1260 = vmatprep.subr.mxu0 0.0
        %1261 = vmatpush1.xpose.msra.mxu0 0.0
        %1262 = vmatprep.subr.mxu0 0.0
        %1263 = vmatpush1.xpose.msra.mxu0 0.0
        %1264 = vmatprep.subr.mxu0 0.0
        %1265 = vmatpush1.xpose.msra.mxu0 0.0
        %1266 = vmatprep.subr.mxu0 0.0
        %1267 = vmatpush1.xpose.msra.mxu0 0.0
        %1268 = vmatprep.subr.mxu0 0.0
        %1269 = vmatpush1.xpose.msra.mxu0 0.0
        %1270 = vmatprep.subr.mxu0 0.0
        %1271 = vmatpush1.xpose.msra.mxu0 0.0
        %1272 = vmatprep.subr.mxu0 0.0
        %1273 = vmatpush1.xpose.msra.mxu0 0.0
        %1274 = vmatprep.subr.mxu0 0.0
        %1275 = vmatpush1.xpose.msra.mxu0 0.0
        %1276 = vmatprep.subr.mxu0 0.0
        %1277 = vmatpush1.xpose.msra.mxu0 0.0
        %1278 = vmatprep.subr.mxu0 0.0
        %1279 = vmatpush1.xpose.msra.mxu0 0.0
        %1280 = vmatprep.subr.mxu0 0.0
        %1281 = vmatpush1.xpose.msra.mxu0 0.0
        %1282 = vmatprep.subr.mxu0 0.0
        %1283 = vmatpush1.xpose.msra.mxu0 0.0
        %1284 = vmatprep.subr.mxu0 0.0
        %1285 = vmatpush1.xpose.msra.mxu0 0.0
        %1286 = vmatprep.subr.mxu0 0.0
        %1287 = vmatpush1.xpose.msra.mxu0 0.0
        %1288 = vmatprep.subr.mxu0 0.0
        %1289 = vmatpush1.xpose.msra.mxu0 0.0
        %1290 = vmatprep.subr.mxu0 0.0
        %1291 = vmatpush1.xpose.msra.mxu0 0.0
        %1292 = vmatprep.subr.mxu0 0.0
        %1293 = vmatpush1.xpose.msra.mxu0 0.0
        %1294 = vmatprep.subr.mxu0 0.0
        %1295 = vmatpush1.xpose.msra.mxu0 0.0
        %1296 = vmatprep.subr.mxu0 0.0
        %1297 = vmatpush1.xpose.msra.mxu0 0.0
        %1298 = vmatprep.subr.mxu0 0.0
        %1299 = vmatpush1.xpose.msra.mxu0 0.0
        %1300 = vmatprep.subr.mxu0 0.0
        %1301 = vmatpush1.xpose.msra.mxu0 0.0
        %1302 = vmatprep.subr.mxu0 0.0
        %1303 = vmatpush1.xpose.msra.mxu0 0.0
        %1304 = vmatprep.subr.mxu0 0.0
        %1305 = vmatpush1.xpose.msra.mxu0 0.0
        %1306 = vmatprep.subr.mxu0 0.0
        %1307 = vmatpush1.xpose.msra.mxu0 0.0
        %1308 = vmatprep.mubr.f32.mxu0 0.0
        %1309 = vmatmul.mubr.f32.gmra.mrb[0].mxu0 %v1227
        %v1310 = vpop.f32.mrb[0].mxu0
        %v1311 = vadd.f32 0.0, %v1310
        %v1312 = vpop.f32.mrb[0].mxu0
        %1313 = vmatprep.mubr.f32.mxu0 0.0
        %1314 = vmatmul.mubr.f32.gmra.mrb[0].mxu0 %v1230
        %v1315 = vpop.f32.mrb[0].mxu0
        %v1316 = vadd.f32 0.0, %v1315
        %v1317 = vpop.f32.mrb[0].mxu0
        %1318 = vdwg.mxu0
        %v1320 = vlaneseq
        %v1321 = vshrl.u32 %v1320, 7
        %v1322 = vsub.s32 0, %v1321
        %v1323 = vrot.slane %v1027, %v1322
        %v1325 = vadd.f32 %v1323, %v1311
        %v1326 = vadd.f32 %v1323, %v1316
        %1327 = vrot.lane.b32.xlu0 %v823, 120
        %v1328 = vpop.permute.xlu0 %1327
        %1329 = vrot.lane.b32.xlu0 %v828, 120
        %v1330 = vpop.permute.xlu0 %1329
        %1331 = vrot.lane.b32.xlu0 %v921, 120
        %v1332 = vpop.permute.xlu0 %1331
        %1333 = vrot.lane.b32.xlu0 %v926, 120
        %v1334 = vpop.permute.xlu0 %1333
        %v1335 = vsel %vm1028, %v1328, 0
        %v1337 = vsel %vm1028, %v1330, 0
        %v1339 = vsel %vm1028, %v1332, 0
        %v1341 = vsel %vm1028, %v1334, 0
        %1343 = vmatprep.subr.mxu0 0.0
        %1344 = vmatpush1.xpose.msra.mxu0 %v1339
        %1345 = vmatprep.subr.mxu0 0.0
        %1346 = vmatpush1.xpose.msra.mxu0 %v1341
        %1347 = vmatprep.subr.mxu0 0.0
        %1348 = vmatpush1.xpose.msra.mxu0 0.0
        %1349 = vmatprep.subr.mxu0 0.0
        %1350 = vmatpush1.xpose.msra.mxu0 0.0
        %1351 = vmatprep.subr.mxu0 0.0
        %1352 = vmatpush1.xpose.msra.mxu0 0.0
        %1353 = vmatprep.subr.mxu0 0.0
        %1354 = vmatpush1.xpose.msra.mxu0 0.0
        %1355 = vmatprep.subr.mxu0 0.0
        %1356 = vmatpush1.xpose.msra.mxu0 0.0
        %1357 = vmatprep.subr.mxu0 0.0
        %1358 = vmatpush1.xpose.msra.mxu0 0.0
        %1359 = vmatprep.subr.mxu0 0.0
        %1360 = vmatpush1.xpose.msra.mxu0 0.0
        %1361 = vmatprep.subr.mxu0 0.0
        %1362 = vmatpush1.xpose.msra.mxu0 0.0
        %1363 = vmatprep.subr.mxu0 0.0
        %1364 = vmatpush1.xpose.msra.mxu0 0.0
        %1365 = vmatprep.subr.mxu0 0.0
        %1366 = vmatpush1.xpose.msra.mxu0 0.0
        %1367 = vmatprep.subr.mxu0 0.0
        %1368 = vmatpush1.xpose.msra.mxu0 0.0
        %1369 = vmatprep.subr.mxu0 0.0
        %1370 = vmatpush1.xpose.msra.mxu0 0.0
        %1371 = vmatprep.subr.mxu0 0.0
        %1372 = vmatpush1.xpose.msra.mxu0 0.0
        %1373 = vmatprep.subr.mxu0 0.0
        %1374 = vmatpush1.xpose.msra.mxu0 0.0
        %1375 = vmatprep.subr.mxu0 0.0
        %1376 = vmatpush1.xpose.msra.mxu0 0.0
        %1377 = vmatprep.subr.mxu0 0.0
        %1378 = vmatpush1.xpose.msra.mxu0 0.0
        %1379 = vmatprep.subr.mxu0 0.0
        %1380 = vmatpush1.xpose.msra.mxu0 0.0
        %1381 = vmatprep.subr.mxu0 0.0
        %1382 = vmatpush1.xpose.msra.mxu0 0.0
        %1383 = vmatprep.subr.mxu0 0.0
        %1384 = vmatpush1.xpose.msra.mxu0 0.0
        %1385 = vmatprep.subr.mxu0 0.0
        %1386 = vmatpush1.xpose.msra.mxu0 0.0
        %1387 = vmatprep.subr.mxu0 0.0
        %1388 = vmatpush1.xpose.msra.mxu0 0.0
        %1389 = vmatprep.subr.mxu0 0.0
        %1390 = vmatpush1.xpose.msra.mxu0 0.0
        %1391 = vmatprep.subr.mxu0 0.0
        %1392 = vmatpush1.xpose.msra.mxu0 0.0
        %1393 = vmatprep.subr.mxu0 0.0
        %1394 = vmatpush1.xpose.msra.mxu0 0.0
        %1395 = vmatprep.subr.mxu0 0.0
        %1396 = vmatpush1.xpose.msra.mxu0 0.0
        %1397 = vmatprep.subr.mxu0 0.0
        %1398 = vmatpush1.xpose.msra.mxu0 0.0
        %1399 = vmatprep.subr.mxu0 0.0
        %1400 = vmatpush1.xpose.msra.mxu0 0.0
        %1401 = vmatprep.subr.mxu0 0.0
        %1402 = vmatpush1.xpose.msra.mxu0 0.0
        %1403 = vmatprep.subr.mxu0 0.0
        %1404 = vmatpush1.xpose.msra.mxu0 0.0
        %1405 = vmatprep.subr.mxu0 0.0
        %1406 = vmatpush1.xpose.msra.mxu0 0.0
        %1407 = vmatprep.mubr.f32.mxu0 0.0
        %1408 = vmatmul.mubr.f32.gmra.mrb[0].mxu0 %v1335
        %v1409 = vpop.f32.mrb[0].mxu0
        %v1410 = vadd.f32 0.0, %v1409
        %v1411 = vpop.f32.mrb[0].mxu0
        %1412 = vmatprep.mubr.f32.mxu0 0.0
        %1413 = vmatmul.mubr.f32.gmra.mrb[0].mxu0 %v1337
        %v1414 = vpop.f32.mrb[0].mxu0
        %v1415 = vadd.f32 0.0, %v1414
        %v1416 = vpop.f32.mrb[0].mxu0
        %1417 = vdwg.mxu0
        %v1418 = vmul.f32 %v1410, 0.35355338
        %v1419 = vmul.f32 %v1415, 0.35355338
        %v1420 = vsel %vm1118, %v1418, -inf
        %1421 = vmax.xlane.f32.xlu0 %v1420
        %v1422 = vpop.xlane.xlu0 %1421
        %v1423 = vsel %vm1118, %v1419, -inf
        %1424 = vmax.xlane.f32.xlu0 %v1423
        %v1425 = vpop.xlane.xlu0 %1424
        %v1426 = vsub.f32 %v1418, %v1422
        %v1427 = vsub.f32 %v1419, %v1425
        %v1428 = vmul.f32 %v1426, 1.442695
        %v1429 = vpow.pop %v1428
        %v1430 = vmul.f32 %v1427, 1.442695
        %v1431 = vpow.pop %v1430
        %v1432 = vsel %vm1118, %v1429, 0.0
        %1433 = vadd.xlane.f32.xlu0 %v1432
        %v1434 = vpop.xlane.xlu0 %1433
        %v1435 = vsel %vm1118, %v1431, 0.0
        %1436 = vadd.xlane.f32.xlu0 %v1435
        %v1437 = vpop.xlane.xlu0 %1436
        %v1438 = vrcp.pop %v1434
        %v1439 = vmul.f32 %v1429, %v1438
        %v1440 = vrcp.pop %v1437
        %v1441 = vmul.f32 %v1431, %v1440
        %1444 = vrot.lane.b32.xlu0 %v1019, 120
        %v1445 = vpop.permute.xlu0 %1444
        %1446 = vrot.lane.b32.xlu0 %v1024, 120
        %v1447 = vpop.permute.xlu0 %1446
        %v1451 = vsel %vm1118, %v1439, 0
        %v1454 = vsel %vm1118, %v1441, 0
        %1456 = vmatprep.subr.mxu0 0.0
        %1457 = vmatpush1.msra.mxu0 %v1445
        %1458 = vmatprep.subr.mxu0 0.0
        %1459 = vmatpush1.msra.mxu0 %v1447
        %1460 = vmatprep.subr.mxu0 0.0
        %1461 = vmatpush1.msra.mxu0 0.0
        %1462 = vmatprep.subr.mxu0 0.0
        %1463 = vmatpush1.msra.mxu0 0.0
        %1464 = vmatprep.subr.mxu0 0.0
        %1465 = vmatpush1.msra.mxu0 0.0
        %1466 = vmatprep.subr.mxu0 0.0
        %1467 = vmatpush1.msra.mxu0 0.0
        %1468 = vmatprep.subr.mxu0 0.0
        %1469 = vmatpush1.msra.mxu0 0.0
        %1470 = vmatprep.subr.mxu0 0.0
        %1471 = vmatpush1.msra.mxu0 0.0
        %1472 = vmatprep.subr.mxu0 0.0
        %1473 = vmatpush1.msra.mxu0 0.0
        %1474 = vmatprep.subr.mxu0 0.0
        %1475 = vmatpush1.msra.mxu0 0.0
        %1476 = vmatprep.subr.mxu0 0.0
        %1477 = vmatpush1.msra.mxu0 0.0
        %1478 = vmatprep.subr.mxu0 0.0
        %1479 = vmatpush1.msra.mxu0 0.0
        %1480 = vmatprep.subr.mxu0 0.0
        %1481 = vmatpush1.msra.mxu0 0.0
        %1482 = vmatprep.subr.mxu0 0.0
        %1483 = vmatpush1.msra.mxu0 0.0
        %1484 = vmatprep.subr.mxu0 0.0
        %1485 = vmatpush1.msra.mxu0 0.0
        %1486 = vmatprep.subr.mxu0 0.0
        %1487 = vmatpush1.msra.mxu0 0.0
        %1488 = vmatprep.subr.mxu0 0.0
        %1489 = vmatpush1.msra.mxu0 0.0
        %1490 = vmatprep.subr.mxu0 0.0
        %1491 = vmatpush1.msra.mxu0 0.0
        %1492 = vmatprep.subr.mxu0 0.0
        %1493 = vmatpush1.msra.mxu0 0.0
        %1494 = vmatprep.subr.mxu0 0.0
        %1495 = vmatpush1.msra.mxu0 0.0
        %1496 = vmatprep.subr.mxu0 0.0
        %1497 = vmatpush1.msra.mxu0 0.0
        %1498 = vmatprep.subr.mxu0 0.0
        %1499 = vmatpush1.msra.mxu0 0.0
        %1500 = vmatprep.subr.mxu0 0.0
        %1501 = vmatpush1.msra.mxu0 0.0
        %1502 = vmatprep.subr.mxu0 0.0
        %1503 = vmatpush1.msra.mxu0 0.0
        %1504 = vmatprep.subr.mxu0 0.0
        %1505 = vmatpush1.msra.mxu0 0.0
        %1506 = vmatprep.subr.mxu0 0.0
        %1507 = vmatpush1.msra.mxu0 0.0
        %1508 = vmatprep.subr.mxu0 0.0
        %1509 = vmatpush1.msra.mxu0 0.0
        %1510 = vmatprep.subr.mxu0 0.0
        %1511 = vmatpush1.msra.mxu0 0.0
        %1512 = vmatprep.subr.mxu0 0.0
        %1513 = vmatpush1.msra.mxu0 0.0
        %1514 = vmatprep.subr.mxu0 0.0
        %1515 = vmatpush1.msra.mxu0 0.0
        %1516 = vmatprep.subr.mxu0 0.0
        %1517 = vmatpush1.msra.mxu0 0.0
        %1518 = vmatprep.subr.mxu0 0.0
        %1519 = vmatpush1.msra.mxu0 0.0
        %1520 = vmatprep.mubr.f32.mxu0 0.0
        %1521 = vmatmul.mubr.f32.gmra.mrb[0].mxu0 %v1451
        %v1522 = vpop.f32.mrb[0].mxu0
        %v1523 = vadd.f32 0.0, %v1522
        %v1524 = vpop.f32.mrb[0].mxu0
        %1525 = vmatprep.mubr.f32.mxu0 0.0
        %1526 = vmatmul.mubr.f32.gmra.mrb[0].mxu0 %v1454
        %v1527 = vpop.f32.mrb[0].mxu0
        %v1528 = vadd.f32 0.0, %v1527
        %v1529 = vpop.f32.mrb[0].mxu0
        %1530 = vdwg.mxu0
        %1531 = vrot.lane.b32.xlu0 %v1222, 120
        %v1532 = vpop.permute.xlu0 %1531
        %1533 = vrot.lane.b32.xlu0 %v1223, 120
        %v1534 = vpop.permute.xlu0 %1533
        %1535 = vrot.lane.b32.xlu0 %v1224, 120
        %v1536 = vpop.permute.xlu0 %1535
        %1537 = vrot.lane.b32.xlu0 %v1225, 120
        %v1538 = vpop.permute.xlu0 %1537
        %v1540 = vsel %vm1028, %v1523, 0
        %v1543 = vsel %vm1028, %v1528, 0
        %v1545 = vsel %vm1028, %v1532, 0
        %v1547 = vsel %vm1028, %v1534, 0
        %v1549 = vsel %vm1028, %v1536, 0
        %v1551 = vsel %vm1028, %v1538, 0
        %1553 = vmatprep.subr.mxu0 0.0
        %1554 = vmatpush1.xpose.msra.mxu0 %v1545
        %1555 = vmatprep.subr.mxu0 0.0
        %1556 = vmatpush1.xpose.msra.mxu0 %v1547
        %1557 = vmatprep.subr.mxu0 0.0
        %1558 = vmatpush1.xpose.msra.mxu0 %v1549
        %1559 = vmatprep.subr.mxu0 0.0
        %1560 = vmatpush1.xpose.msra.mxu0 %v1551
        %1561 = vmatprep.subr.mxu0 0.0
        %1562 = vmatpush1.xpose.msra.mxu0 0.0
        %1563 = vmatprep.subr.mxu0 0.0
        %1564 = vmatpush1.xpose.msra.mxu0 0.0
        %1565 = vmatprep.subr.mxu0 0.0
        %1566 = vmatpush1.xpose.msra.mxu0 0.0
        %1567 = vmatprep.subr.mxu0 0.0
        %1568 = vmatpush1.xpose.msra.mxu0 0.0
        %1569 = vmatprep.subr.mxu0 0.0
        %1570 = vmatpush1.xpose.msra.mxu0 0.0
        %1571 = vmatprep.subr.mxu0 0.0
        %1572 = vmatpush1.xpose.msra.mxu0 0.0
        %1573 = vmatprep.subr.mxu0 0.0
        %1574 = vmatpush1.xpose.msra.mxu0 0.0
        %1575 = vmatprep.subr.mxu0 0.0
        %1576 = vmatpush1.xpose.msra.mxu0 0.0
        %1577 = vmatprep.subr.mxu0 0.0
        %1578 = vmatpush1.xpose.msra.mxu0 0.0
        %1579 = vmatprep.subr.mxu0 0.0
        %1580 = vmatpush1.xpose.msra.mxu0 0.0
        %1581 = vmatprep.subr.mxu0 0.0
        %1582 = vmatpush1.xpose.msra.mxu0 0.0
        %1583 = vmatprep.subr.mxu0 0.0
        %1584 = vmatpush1.xpose.msra.mxu0 0.0
        %1585 = vmatprep.subr.mxu0 0.0
        %1586 = vmatpush1.xpose.msra.mxu0 0.0
        %1587 = vmatprep.subr.mxu0 0.0
        %1588 = vmatpush1.xpose.msra.mxu0 0.0
        %1589 = vmatprep.subr.mxu0 0.0
        %1590 = vmatpush1.xpose.msra.mxu0 0.0
        %1591 = vmatprep.subr.mxu0 0.0
        %1592 = vmatpush1.xpose.msra.mxu0 0.0
        %1593 = vmatprep.subr.mxu0 0.0
        %1594 = vmatpush1.xpose.msra.mxu0 0.0
        %1595 = vmatprep.subr.mxu0 0.0
        %1596 = vmatpush1.xpose.msra.mxu0 0.0
        %1597 = vmatprep.subr.mxu0 0.0
        %1598 = vmatpush1.xpose.msra.mxu0 0.0
        %1599 = vmatprep.subr.mxu0 0.0
        %1600 = vmatpush1.xpose.msra.mxu0 0.0
        %1601 = vmatprep.subr.mxu0 0.0
        %1602 = vmatpush1.xpose.msra.mxu0 0.0
        %1603 = vmatprep.subr.mxu0 0.0
        %1604 = vmatpush1.xpose.msra.mxu0 0.0
        %1605 = vmatprep.subr.mxu0 0.0
        %1606 = vmatpush1.xpose.msra.mxu0 0.0
        %1607 = vmatprep.subr.mxu0 0.0
        %1608 = vmatpush1.xpose.msra.mxu0 0.0
        %1609 = vmatprep.subr.mxu0 0.0
        %1610 = vmatpush1.xpose.msra.mxu0 0.0
        %1611 = vmatprep.subr.mxu0 0.0
        %1612 = vmatpush1.xpose.msra.mxu0 0.0
        %1613 = vmatprep.subr.mxu0 0.0
        %1614 = vmatpush1.xpose.msra.mxu0 0.0
        %1615 = vmatprep.subr.mxu0 0.0
        %1616 = vmatpush1.xpose.msra.mxu0 0.0
        %1617 = vmatprep.mubr.f32.mxu0 0.0
        %1618 = vmatmul.mubr.f32.gmra.mrb[0].mxu0 %v1540
        %v1619 = vpop.f32.mrb[0].mxu0
        %v1620 = vadd.f32 0.0, %v1619
        %v1621 = vpop.f32.mrb[0].mxu0
        %1622 = vmatprep.mubr.f32.mxu0 0.0
        %1623 = vmatmul.mubr.f32.gmra.mrb[0].mxu0 %v1543
        %v1624 = vpop.f32.mrb[0].mxu0
        %v1625 = vadd.f32 0.0, %v1624
        %v1626 = vpop.f32.mrb[0].mxu0
        %1627 = vdwg.mxu0
        %v1628 = vadd.f32 %v1325, %v1620
        %v1629 = vadd.f32 %v1326, %v1625
        %1630 = vrot.lane.b32.xlu0 %v823, 112
        %v1631 = vpop.permute.xlu0 %1630
        %1632 = vrot.lane.b32.xlu0 %v828, 112
        %v1633 = vpop.permute.xlu0 %1632
        %1634 = vrot.lane.b32.xlu0 %v921, 112
        %v1635 = vpop.permute.xlu0 %1634
        %1636 = vrot.lane.b32.xlu0 %v926, 112
        %v1637 = vpop.permute.xlu0 %1636
        %v1638 = vsel %vm1028, %v1631, 0
        %v1640 = vsel %vm1028, %v1633, 0
        %v1642 = vsel %vm1028, %v1635, 0
        %v1644 = vsel %vm1028, %v1637, 0
        %1646 = vmatprep.subr.mxu0 0.0
        %1647 = vmatpush1.xpose.msra.mxu0 %v1642
        %1648 = vmatprep.subr.mxu0 0.0
        %1649 = vmatpush1.xpose.msra.mxu0 %v1644
        %1650 = vmatprep.subr.mxu0 0.0
        %1651 = vmatpush1.xpose.msra.mxu0 0.0
        %1652 = vmatprep.subr.mxu0 0.0
        %1653 = vmatpush1.xpose.msra.mxu0 0.0
        %1654 = vmatprep.subr.mxu0 0.0
        %1655 = vmatpush1.xpose.msra.mxu0 0.0
        %1656 = vmatprep.subr.mxu0 0.0
        %1657 = vmatpush1.xpose.msra.mxu0 0.0
        %1658 = vmatprep.subr.mxu0 0.0
        %1659 = vmatpush1.xpose.msra.mxu0 0.0
        %1660 = vmatprep.subr.mxu0 0.0
        %1661 = vmatpush1.xpose.msra.mxu0 0.0
        %1662 = vmatprep.subr.mxu0 0.0
        %1663 = vmatpush1.xpose.msra.mxu0 0.0
        %1664 = vmatprep.subr.mxu0 0.0
        %1665 = vmatpush1.xpose.msra.mxu0 0.0
        %1666 = vmatprep.subr.mxu0 0.0
        %1667 = vmatpush1.xpose.msra.mxu0 0.0
        %1668 = vmatprep.subr.mxu0 0.0
        %1669 = vmatpush1.xpose.msra.mxu0 0.0
        %1670 = vmatprep.subr.mxu0 0.0
        %1671 = vmatpush1.xpose.msra.mxu0 0.0
        %1672 = vmatprep.subr.mxu0 0.0
        %1673 = vmatpush1.xpose.msra.mxu0 0.0
        %1674 = vmatprep.subr.mxu0 0.0
        %1675 = vmatpush1.xpose.msra.mxu0 0.0
        %1676 = vmatprep.subr.mxu0 0.0
        %1677 = vmatpush1.xpose.msra.mxu0 0.0
        %1678 = vmatprep.subr.mxu0 0.0
        %1679 = vmatpush1.xpose.msra.mxu0 0.0
        %1680 = vmatprep.subr.mxu0 0.0
        %1681 = vmatpush1.xpose.msra.mxu0 0.0
        %1682 = vmatprep.subr.mxu0 0.0
        %1683 = vmatpush1.xpose.msra.mxu0 0.0
        %1684 = vmatprep.subr.mxu0 0.0
        %1685 = vmatpush1.xpose.msra.mxu0 0.0
        %1686 = vmatprep.subr.mxu0 0.0
        %1687 = vmatpush1.xpose.msra.mxu0 0.0
        %1688 = vmatprep.subr.mxu0 0.0
        %1689 = vmatpush1.xpose.msra.mxu0 0.0
        %1690 = vmatprep.subr.mxu0 0.0
        %1691 = vmatpush1.xpose.msra.mxu0 0.0
        %1692 = vmatprep.subr.mxu0 0.0
        %1693 = vmatpush1.xpose.msra.mxu0 0.0
        %1694 = vmatprep.subr.mxu0 0.0
        %1695 = vmatpush1.xpose.msra.mxu0 0.0
        %1696 = vmatprep.subr.mxu0 0.0
        %1697 = vmatpush1.xpose.msra.mxu0 0.0
        %1698 = vmatprep.subr.mxu0 0.0
        %1699 = vmatpush1.xpose.msra.mxu0 0.0
        %1700 = vmatprep.subr.mxu0 0.0
        %1701 = vmatpush1.xpose.msra.mxu0 0.0
        %1702 = vmatprep.subr.mxu0 0.0
        %1703 = vmatpush1.xpose.msra.mxu0 0.0
        %1704 = vmatprep.subr.mxu0 0.0
        %1705 = vmatpush1.xpose.msra.mxu0 0.0
        %1706 = vmatprep.subr.mxu0 0.0
        %1707 = vmatpush1.xpose.msra.mxu0 0.0
        %1708 = vmatprep.subr.mxu0 0.0
        %1709 = vmatpush1.xpose.msra.mxu0 0.0
        %1710 = vmatprep.mubr.f32.mxu0 0.0
        %1711 = vmatmul.mubr.f32.gmra.mrb[0].mxu0 %v1638
        %v1712 = vpop.f32.mrb[0].mxu0
        %v1713 = vadd.f32 0.0, %v1712
        %v1714 = vpop.f32.mrb[0].mxu0
        %1715 = vmatprep.mubr.f32.mxu0 0.0
        %1716 = vmatmul.mubr.f32.gmra.mrb[0].mxu0 %v1640
        %v1717 = vpop.f32.mrb[0].mxu0
        %v1718 = vadd.f32 0.0, %v1717
        %v1719 = vpop.f32.mrb[0].mxu0
        %1720 = vdwg.mxu0
        %v1721 = vmul.f32 %v1713, 0.35355338
        %v1722 = vmul.f32 %v1718, 0.35355338
        %v1723 = vsel %vm1118, %v1721, -inf
        %1724 = vmax.xlane.f32.xlu0 %v1723
        %v1725 = vpop.xlane.xlu0 %1724
        %v1726 = vsel %vm1118, %v1722, -inf
        %1727 = vmax.xlane.f32.xlu0 %v1726
        %v1728 = vpop.xlane.xlu0 %1727
        %v1729 = vsub.f32 %v1721, %v1725
        %v1730 = vsub.f32 %v1722, %v1728
        %v1731 = vmul.f32 %v1729, 1.442695
        %v1732 = vpow.pop %v1731
        %v1733 = vmul.f32 %v1730, 1.442695
        %v1734 = vpow.pop %v1733
        %v1735 = vsel %vm1118, %v1732, 0.0
        %1736 = vadd.xlane.f32.xlu0 %v1735
        %v1737 = vpop.xlane.xlu0 %1736
        %v1738 = vsel %vm1118, %v1734, 0.0
        %1739 = vadd.xlane.f32.xlu0 %v1738
        %v1740 = vpop.xlane.xlu0 %1739
        %v1741 = vrcp.pop %v1737
        %v1742 = vmul.f32 %v1732, %v1741
        %v1743 = vrcp.pop %v1740
        %v1744 = vmul.f32 %v1734, %v1743
        %1745 = vrot.lane.b32.xlu0 %v1019, 112
        %v1746 = vpop.permute.xlu0 %1745
        %1747 = vrot.lane.b32.xlu0 %v1024, 112
        %v1748 = vpop.permute.xlu0 %1747
        %v1752 = vsel %vm1118, %v1742, 0
        %v1755 = vsel %vm1118, %v1744, 0
        %1757 = vmatprep.subr.mxu0 0.0
        %1758 = vmatpush1.msra.mxu0 %v1746
        %1759 = vmatprep.subr.mxu0 0.0
        %1760 = vmatpush1.msra.mxu0 %v1748
        %1761 = vmatprep.subr.mxu0 0.0
        %1762 = vmatpush1.msra.mxu0 0.0
        %1763 = vmatprep.subr.mxu0 0.0
        %1764 = vmatpush1.msra.mxu0 0.0
        %1765 = vmatprep.subr.mxu0 0.0
        %1766 = vmatpush1.msra.mxu0 0.0
        %1767 = vmatprep.subr.mxu0 0.0
        %1768 = vmatpush1.msra.mxu0 0.0
        %1769 = vmatprep.subr.mxu0 0.0
        %1770 = vmatpush1.msra.mxu0 0.0
        %1771 = vmatprep.subr.mxu0 0.0
        %1772 = vmatpush1.msra.mxu0 0.0
        %1773 = vmatprep.subr.mxu0 0.0
        %1774 = vmatpush1.msra.mxu0 0.0
        %1775 = vmatprep.subr.mxu0 0.0
        %1776 = vmatpush1.msra.mxu0 0.0
        %1777 = vmatprep.subr.mxu0 0.0
        %1778 = vmatpush1.msra.mxu0 0.0
        %1779 = vmatprep.subr.mxu0 0.0
        %1780 = vmatpush1.msra.mxu0 0.0
        %1781 = vmatprep.subr.mxu0 0.0
        %1782 = vmatpush1.msra.mxu0 0.0
        %1783 = vmatprep.subr.mxu0 0.0
        %1784 = vmatpush1.msra.mxu0 0.0
        %1785 = vmatprep.subr.mxu0 0.0
        %1786 = vmatpush1.msra.mxu0 0.0
        %1787 = vmatprep.subr.mxu0 0.0
        %1788 = vmatpush1.msra.mxu0 0.0
        %1789 = vmatprep.subr.mxu0 0.0
        %1790 = vmatpush1.msra.mxu0 0.0
        %1791 = vmatprep.subr.mxu0 0.0
        %1792 = vmatpush1.msra.mxu0 0.0
        %1793 = vmatprep.subr.mxu0 0.0
        %1794 = vmatpush1.msra.mxu0 0.0
        %1795 = vmatprep.subr.mxu0 0.0
        %1796 = vmatpush1.msra.mxu0 0.0
        %1797 = vmatprep.subr.mxu0 0.0
        %1798 = vmatpush1.msra.mxu0 0.0
        %1799 = vmatprep.subr.mxu0 0.0
        %1800 = vmatpush1.msra.mxu0 0.0
        %1801 = vmatprep.subr.mxu0 0.0
        %1802 = vmatpush1.msra.mxu0 0.0
        %1803 = vmatprep.subr.mxu0 0.0
        %1804 = vmatpush1.msra.mxu0 0.0
        %1805 = vmatprep.subr.mxu0 0.0
        %1806 = vmatpush1.msra.mxu0 0.0
        %1807 = vmatprep.subr.mxu0 0.0
        %1808 = vmatpush1.msra.mxu0 0.0
        %1809 = vmatprep.subr.mxu0 0.0
        %1810 = vmatpush1.msra.mxu0 0.0
        %1811 = vmatprep.subr.mxu0 0.0
        %1812 = vmatpush1.msra.mxu0 0.0
        %1813 = vmatprep.subr.mxu0 0.0
        %1814 = vmatpush1.msra.mxu0 0.0
        %1815 = vmatprep.subr.mxu0 0.0
        %1816 = vmatpush1.msra.mxu0 0.0
        %1817 = vmatprep.subr.mxu0 0.0
        %1818 = vmatpush1.msra.mxu0 0.0
        %1819 = vmatprep.subr.mxu0 0.0
        %1820 = vmatpush1.msra.mxu0 0.0
        %1821 = vmatprep.mubr.f32.mxu0 0.0
        %1822 = vmatmul.mubr.f32.gmra.mrb[0].mxu0 %v1752
        %v1823 = vpop.f32.mrb[0].mxu0
        %v1824 = vadd.f32 0.0, %v1823
        %v1825 = vpop.f32.mrb[0].mxu0
        %1826 = vmatprep.mubr.f32.mxu0 0.0
        %1827 = vmatmul.mubr.f32.gmra.mrb[0].mxu0 %v1755
        %v1828 = vpop.f32.mrb[0].mxu0
        %v1829 = vadd.f32 0.0, %v1828
        %v1830 = vpop.f32.mrb[0].mxu0
        %1831 = vdwg.mxu0
        %1832 = vrot.lane.b32.xlu0 %v1222, 112
        %v1833 = vpop.permute.xlu0 %1832
        %1834 = vrot.lane.b32.xlu0 %v1223, 112
        %v1835 = vpop.permute.xlu0 %1834
        %1836 = vrot.lane.b32.xlu0 %v1224, 112
        %v1837 = vpop.permute.xlu0 %1836
        %1838 = vrot.lane.b32.xlu0 %v1225, 112
        %v1839 = vpop.permute.xlu0 %1838
        %v1841 = vsel %vm1028, %v1824, 0
        %v1844 = vsel %vm1028, %v1829, 0
        %v1846 = vsel %vm1028, %v1833, 0
        %v1848 = vsel %vm1028, %v1835, 0
        %v1850 = vsel %vm1028, %v1837, 0
        %v1852 = vsel %vm1028, %v1839, 0
        %1854 = vmatprep.subr.mxu0 0.0
        %1855 = vmatpush1.xpose.msra.mxu0 %v1846
        %1856 = vmatprep.subr.mxu0 0.0
        %1857 = vmatpush1.xpose.msra.mxu0 %v1848
        %1858 = vmatprep.subr.mxu0 0.0
        %1859 = vmatpush1.xpose.msra.mxu0 %v1850
        %1860 = vmatprep.subr.mxu0 0.0
        %1861 = vmatpush1.xpose.msra.mxu0 %v1852
        %1862 = vmatprep.subr.mxu0 0.0
        %1863 = vmatpush1.xpose.msra.mxu0 0.0
        %1864 = vmatprep.subr.mxu0 0.0
        %1865 = vmatpush1.xpose.msra.mxu0 0.0
        %1866 = vmatprep.subr.mxu0 0.0
        %1867 = vmatpush1.xpose.msra.mxu0 0.0
        %1868 = vmatprep.subr.mxu0 0.0
        %1869 = vmatpush1.xpose.msra.mxu0 0.0
        %1870 = vmatprep.subr.mxu0 0.0
        %1871 = vmatpush1.xpose.msra.mxu0 0.0
        %1872 = vmatprep.subr.mxu0 0.0
        %1873 = vmatpush1.xpose.msra.mxu0 0.0
        %1874 = vmatprep.subr.mxu0 0.0
        %1875 = vmatpush1.xpose.msra.mxu0 0.0
        %1876 = vmatprep.subr.mxu0 0.0
        %1877 = vmatpush1.xpose.msra.mxu0 0.0
        %1878 = vmatprep.subr.mxu0 0.0
        %1879 = vmatpush1.xpose.msra.mxu0 0.0
        %1880 = vmatprep.subr.mxu0 0.0
        %1881 = vmatpush1.xpose.msra.mxu0 0.0
        %1882 = vmatprep.subr.mxu0 0.0
        %1883 = vmatpush1.xpose.msra.mxu0 0.0
        %1884 = vmatprep.subr.mxu0 0.0
        %1885 = vmatpush1.xpose.msra.mxu0 0.0
        %1886 = vmatprep.subr.mxu0 0.0
        %1887 = vmatpush1.xpose.msra.mxu0 0.0
        %1888 = vmatprep.subr.mxu0 0.0
        %1889 = vmatpush1.xpose.msra.mxu0 0.0
        %1890 = vmatprep.subr.mxu0 0.0
        %1891 = vmatpush1.xpose.msra.mxu0 0.0
        %1892 = vmatprep.subr.mxu0 0.0
        %1893 = vmatpush1.xpose.msra.mxu0 0.0
        %1894 = vmatprep.subr.mxu0 0.0
        %1895 = vmatpush1.xpose.msra.mxu0 0.0
        %1896 = vmatprep.subr.mxu0 0.0
        %1897 = vmatpush1.xpose.msra.mxu0 0.0
        %1898 = vmatprep.subr.mxu0 0.0
        %1899 = vmatpush1.xpose.msra.mxu0 0.0
        %1900 = vmatprep.subr.mxu0 0.0
        %1901 = vmatpush1.xpose.msra.mxu0 0.0
        %1902 = vmatprep.subr.mxu0 0.0
        %1903 = vmatpush1.xpose.msra.mxu0 0.0
        %1904 = vmatprep.subr.mxu0 0.0
        %1905 = vmatpush1.xpose.msra.mxu0 0.0
        %1906 = vmatprep.subr.mxu0 0.0
        %1907 = vmatpush1.xpose.msra.mxu0 0.0
        %1908 = vmatprep.subr.mxu0 0.0
        %1909 = vmatpush1.xpose.msra.mxu0 0.0
        %1910 = vmatprep.subr.mxu0 0.0
        %1911 = vmatpush1.xpose.msra.mxu0 0.0
        %1912 = vmatprep.subr.mxu0 0.0
        %1913 = vmatpush1.xpose.msra.mxu0 0.0
        %1914 = vmatprep.subr.mxu0 0.0
        %1915 = vmatpush1.xpose.msra.mxu0 0.0
        %1916 = vmatprep.subr.mxu0 0.0
        %1917 = vmatpush1.xpose.msra.mxu0 0.0
        %1918 = vmatprep.mubr.f32.mxu0 0.0
        %1919 = vmatmul.mubr.f32.gmra.mrb[0].mxu0 %v1841
        %v1920 = vpop.f32.mrb[0].mxu0
        %v1921 = vadd.f32 0.0, %v1920
        %v1922 = vpop.f32.mrb[0].mxu0
        %1923 = vmatprep.mubr.f32.mxu0 0.0
        %1924 = vmatmul.mubr.f32.gmra.mrb[0].mxu0 %v1844
        %v1925 = vpop.f32.mrb[0].mxu0
        %v1926 = vadd.f32 0.0, %v1925
        %v1927 = vpop.f32.mrb[0].mxu0
        %1928 = vdwg.mxu0
        %v1929 = vadd.f32 %v1628, %v1921
        %v1930 = vadd.f32 %v1629, %v1926
        %1931 = vrot.lane.b32.xlu0 %v823, 104
        %v1932 = vpop.permute.xlu0 %1931
        %1933 = vrot.lane.b32.xlu0 %v828, 104
        %v1934 = vpop.permute.xlu0 %1933
        %1935 = vrot.lane.b32.xlu0 %v921, 104
        %v1936 = vpop.permute.xlu0 %1935
        %1937 = vrot.lane.b32.xlu0 %v926, 104
        %v1938 = vpop.permute.xlu0 %1937
        %v1939 = vsel %vm1028, %v1932, 0
        %v1941 = vsel %vm1028, %v1934, 0
        %v1943 = vsel %vm1028, %v1936, 0
        %v1945 = vsel %vm1028, %v1938, 0
        %1947 = vmatprep.subr.mxu0 0.0
        %1948 = vmatpush1.xpose.msra.mxu0 %v1943
        %1949 = vmatprep.subr.mxu0 0.0
        %1950 = vmatpush1.xpose.msra.mxu0 %v1945
        %1951 = vmatprep.subr.mxu0 0.0
        %1952 = vmatpush1.xpose.msra.mxu0 0.0
        %1953 = vmatprep.subr.mxu0 0.0
        %1954 = vmatpush1.xpose.msra.mxu0 0.0
        %1955 = vmatprep.subr.mxu0 0.0
        %1956 = vmatpush1.xpose.msra.mxu0 0.0
        %1957 = vmatprep.subr.mxu0 0.0
        %1958 = vmatpush1.xpose.msra.mxu0 0.0
        %1959 = vmatprep.subr.mxu0 0.0
        %1960 = vmatpush1.xpose.msra.mxu0 0.0
        %1961 = vmatprep.subr.mxu0 0.0
        %1962 = vmatpush1.xpose.msra.mxu0 0.0
        %1963 = vmatprep.subr.mxu0 0.0
        %1964 = vmatpush1.xpose.msra.mxu0 0.0
        %1965 = vmatprep.subr.mxu0 0.0
        %1966 = vmatpush1.xpose.msra.mxu0 0.0
        %1967 = vmatprep.subr.mxu0 0.0
        %1968 = vmatpush1.xpose.msra.mxu0 0.0
        %1969 = vmatprep.subr.mxu0 0.0
        %1970 = vmatpush1.xpose.msra.mxu0 0.0
        %1971 = vmatprep.subr.mxu0 0.0
        %1972 = vmatpush1.xpose.msra.mxu0 0.0
        %1973 = vmatprep.subr.mxu0 0.0
        %1974 = vmatpush1.xpose.msra.mxu0 0.0
        %1975 = vmatprep.subr.mxu0 0.0
        %1976 = vmatpush1.xpose.msra.mxu0 0.0
        %1977 = vmatprep.subr.mxu0 0.0
        %1978 = vmatpush1.xpose.msra.mxu0 0.0
        %1979 = vmatprep.subr.mxu0 0.0
        %1980 = vmatpush1.xpose.msra.mxu0 0.0
        %1981 = vmatprep.subr.mxu0 0.0
        %1982 = vmatpush1.xpose.msra.mxu0 0.0
        %1983 = vmatprep.subr.mxu0 0.0
        %1984 = vmatpush1.xpose.msra.mxu0 0.0
        %1985 = vmatprep.subr.mxu0 0.0
        %1986 = vmatpush1.xpose.msra.mxu0 0.0
        %1987 = vmatprep.subr.mxu0 0.0
        %1988 = vmatpush1.xpose.msra.mxu0 0.0
        %1989 = vmatprep.subr.mxu0 0.0
        %1990 = vmatpush1.xpose.msra.mxu0 0.0
        %1991 = vmatprep.subr.mxu0 0.0
        %1992 = vmatpush1.xpose.msra.mxu0 0.0
        %1993 = vmatprep.subr.mxu0 0.0
        %1994 = vmatpush1.xpose.msra.mxu0 0.0
        %1995 = vmatprep.subr.mxu0 0.0
        %1996 = vmatpush1.xpose.msra.mxu0 0.0
        %1997 = vmatprep.subr.mxu0 0.0
        %1998 = vmatpush1.xpose.msra.mxu0 0.0
        %1999 = vmatprep.subr.mxu0 0.0
        %2000 = vmatpush1.xpose.msra.mxu0 0.0
        %2001 = vmatprep.subr.mxu0 0.0
        %2002 = vmatpush1.xpose.msra.mxu0 0.0
        %2003 = vmatprep.subr.mxu0 0.0
        %2004 = vmatpush1.xpose.msra.mxu0 0.0
        %2005 = vmatprep.subr.mxu0 0.0
        %2006 = vmatpush1.xpose.msra.mxu0 0.0
        %2007 = vmatprep.subr.mxu0 0.0
        %2008 = vmatpush1.xpose.msra.mxu0 0.0
        %2009 = vmatprep.subr.mxu0 0.0
        %2010 = vmatpush1.xpose.msra.mxu0 0.0
        %2011 = vmatprep.mubr.f32.mxu0 0.0
        %2012 = vmatmul.mubr.f32.gmra.mrb[0].mxu0 %v1939
        %v2013 = vpop.f32.mrb[0].mxu0
        %v2014 = vadd.f32 0.0, %v2013
        %v2015 = vpop.f32.mrb[0].mxu0
        %2016 = vmatprep.mubr.f32.mxu0 0.0
        %2017 = vmatmul.mubr.f32.gmra.mrb[0].mxu0 %v1941
        %v2018 = vpop.f32.mrb[0].mxu0
        %v2019 = vadd.f32 0.0, %v2018
        %v2020 = vpop.f32.mrb[0].mxu0
        %2021 = vdwg.mxu0
        %v2022 = vmul.f32 %v2014, 0.35355338
        %v2023 = vmul.f32 %v2019, 0.35355338
        %v2024 = vsel %vm1118, %v2022, -inf
        %2025 = vmax.xlane.f32.xlu0 %v2024
        %v2026 = vpop.xlane.xlu0 %2025
        %v2027 = vsel %vm1118, %v2023, -inf
        %2028 = vmax.xlane.f32.xlu0 %v2027
        %v2029 = vpop.xlane.xlu0 %2028
        %v2030 = vsub.f32 %v2022, %v2026
        %v2031 = vsub.f32 %v2023, %v2029
        %v2032 = vmul.f32 %v2030, 1.442695
        %v2033 = vpow.pop %v2032
        %v2034 = vmul.f32 %v2031, 1.442695
        %v2035 = vpow.pop %v2034
        %v2036 = vsel %vm1118, %v2033, 0.0
        %2037 = vadd.xlane.f32.xlu0 %v2036
        %v2038 = vpop.xlane.xlu0 %2037
        %v2039 = vsel %vm1118, %v2035, 0.0
        %2040 = vadd.xlane.f32.xlu0 %v2039
        %v2041 = vpop.xlane.xlu0 %2040
        %v2042 = vrcp.pop %v2038
        %v2043 = vmul.f32 %v2033, %v2042
        %v2044 = vrcp.pop %v2041
        %v2045 = vmul.f32 %v2035, %v2044
        %2046 = vrot.lane.b32.xlu0 %v1019, 104
        %v2047 = vpop.permute.xlu0 %2046
        %2048 = vrot.lane.b32.xlu0 %v1024, 104
        %v2049 = vpop.permute.xlu0 %2048
        %v2053 = vsel %vm1118, %v2043, 0
        %v2056 = vsel %vm1118, %v2045, 0
        %2058 = vmatprep.subr.mxu0 0.0
        %2059 = vmatpush1.msra.mxu0 %v2047
        %2060 = vmatprep.subr.mxu0 0.0
        %2061 = vmatpush1.msra.mxu0 %v2049
        %2062 = vmatprep.subr.mxu0 0.0
        %2063 = vmatpush1.msra.mxu0 0.0
        %2064 = vmatprep.subr.mxu0 0.0
        %2065 = vmatpush1.msra.mxu0 0.0
        %2066 = vmatprep.subr.mxu0 0.0
        %2067 = vmatpush1.msra.mxu0 0.0
        %2068 = vmatprep.subr.mxu0 0.0
        %2069 = vmatpush1.msra.mxu0 0.0
        %2070 = vmatprep.subr.mxu0 0.0
        %2071 = vmatpush1.msra.mxu0 0.0
        %2072 = vmatprep.subr.mxu0 0.0
        %2073 = vmatpush1.msra.mxu0 0.0
        %2074 = vmatprep.subr.mxu0 0.0
        %2075 = vmatpush1.msra.mxu0 0.0
        %2076 = vmatprep.subr.mxu0 0.0
        %2077 = vmatpush1.msra.mxu0 0.0
        %2078 = vmatprep.subr.mxu0 0.0
        %2079 = vmatpush1.msra.mxu0 0.0
        %2080 = vmatprep.subr.mxu0 0.0
        %2081 = vmatpush1.msra.mxu0 0.0
        %2082 = vmatprep.subr.mxu0 0.0
        %2083 = vmatpush1.msra.mxu0 0.0
        %2084 = vmatprep.subr.mxu0 0.0
        %2085 = vmatpush1.msra.mxu0 0.0
        %2086 = vmatprep.subr.mxu0 0.0
        %2087 = vmatpush1.msra.mxu0 0.0
        %2088 = vmatprep.subr.mxu0 0.0
        %2089 = vmatpush1.msra.mxu0 0.0
        %2090 = vmatprep.subr.mxu0 0.0
        %2091 = vmatpush1.msra.mxu0 0.0
        %2092 = vmatprep.subr.mxu0 0.0
        %2093 = vmatpush1.msra.mxu0 0.0
        %2094 = vmatprep.subr.mxu0 0.0
        %2095 = vmatpush1.msra.mxu0 0.0
        %2096 = vmatprep.subr.mxu0 0.0
        %2097 = vmatpush1.msra.mxu0 0.0
        %2098 = vmatprep.subr.mxu0 0.0
        %2099 = vmatpush1.msra.mxu0 0.0
        %2100 = vmatprep.subr.mxu0 0.0
        %2101 = vmatpush1.msra.mxu0 0.0
        %2102 = vmatprep.subr.mxu0 0.0
        %2103 = vmatpush1.msra.mxu0 0.0
        %2104 = vmatprep.subr.mxu0 0.0
        %2105 = vmatpush1.msra.mxu0 0.0
        %2106 = vmatprep.subr.mxu0 0.0
        %2107 = vmatpush1.msra.mxu0 0.0
        %2108 = vmatprep.subr.mxu0 0.0
        %2109 = vmatpush1.msra.mxu0 0.0
        %2110 = vmatprep.subr.mxu0 0.0
        %2111 = vmatpush1.msra.mxu0 0.0
        %2112 = vmatprep.subr.mxu0 0.0
        %2113 = vmatpush1.msra.mxu0 0.0
        %2114 = vmatprep.subr.mxu0 0.0
        %2115 = vmatpush1.msra.mxu0 0.0
        %2116 = vmatprep.subr.mxu0 0.0
        %2117 = vmatpush1.msra.mxu0 0.0
        %2118 = vmatprep.subr.mxu0 0.0
        %2119 = vmatpush1.msra.mxu0 0.0
        %2120 = vmatprep.subr.mxu0 0.0
        %2121 = vmatpush1.msra.mxu0 0.0
        %2122 = vmatprep.mubr.f32.mxu0 0.0
        %2123 = vmatmul.mubr.f32.gmra.mrb[0].mxu0 %v2053
        %v2124 = vpop.f32.mrb[0].mxu0
        %v2125 = vadd.f32 0.0, %v2124
        %v2126 = vpop.f32.mrb[0].mxu0
        %2127 = vmatprep.mubr.f32.mxu0 0.0
        %2128 = vmatmul.mubr.f32.gmra.mrb[0].mxu0 %v2056
        %v2129 = vpop.f32.mrb[0].mxu0
        %v2130 = vadd.f32 0.0, %v2129
        %v2131 = vpop.f32.mrb[0].mxu0
        %2132 = vdwg.mxu0
        %2133 = vrot.lane.b32.xlu0 %v1222, 104
        %v2134 = vpop.permute.xlu0 %2133
        %2135 = vrot.lane.b32.xlu0 %v1223, 104
        %v2136 = vpop.permute.xlu0 %2135
        %2137 = vrot.lane.b32.xlu0 %v1224, 104
        %v2138 = vpop.permute.xlu0 %2137
        %2139 = vrot.lane.b32.xlu0 %v1225, 104
        %v2140 = vpop.permute.xlu0 %2139
        %v2142 = vsel %vm1028, %v2125, 0
        %v2145 = vsel %vm1028, %v2130, 0
        %v2147 = vsel %vm1028, %v2134, 0
        %v2149 = vsel %vm1028, %v2136, 0
        %v2151 = vsel %vm1028, %v2138, 0
        %v2153 = vsel %vm1028, %v2140, 0
        %2155 = vmatprep.subr.mxu0 0.0
        %2156 = vmatpush1.xpose.msra.mxu0 %v2147
        %2157 = vmatprep.subr.mxu0 0.0
        %2158 = vmatpush1.xpose.msra.mxu0 %v2149
        %2159 = vmatprep.subr.mxu0 0.0
        %2160 = vmatpush1.xpose.msra.mxu0 %v2151
        %2161 = vmatprep.subr.mxu0 0.0
        %2162 = vmatpush1.xpose.msra.mxu0 %v2153
        %2163 = vmatprep.subr.mxu0 0.0
        %2164 = vmatpush1.xpose.msra.mxu0 0.0
        %2165 = vmatprep.subr.mxu0 0.0
        %2166 = vmatpush1.xpose.msra.mxu0 0.0
        %2167 = vmatprep.subr.mxu0 0.0
        %2168 = vmatpush1.xpose.msra.mxu0 0.0
        %2169 = vmatprep.subr.mxu0 0.0
        %2170 = vmatpush1.xpose.msra.mxu0 0.0
        %2171 = vmatprep.subr.mxu0 0.0
        %2172 = vmatpush1.xpose.msra.mxu0 0.0
        %2173 = vmatprep.subr.mxu0 0.0
        %2174 = vmatpush1.xpose.msra.mxu0 0.0
        %2175 = vmatprep.subr.mxu0 0.0
        %2176 = vmatpush1.xpose.msra.mxu0 0.0
        %2177 = vmatprep.subr.mxu0 0.0
        %2178 = vmatpush1.xpose.msra.mxu0 0.0
        %2179 = vmatprep.subr.mxu0 0.0
        %2180 = vmatpush1.xpose.msra.mxu0 0.0
        %2181 = vmatprep.subr.mxu0 0.0
        %2182 = vmatpush1.xpose.msra.mxu0 0.0
        %2183 = vmatprep.subr.mxu0 0.0
        %2184 = vmatpush1.xpose.msra.mxu0 0.0
        %2185 = vmatprep.subr.mxu0 0.0
        %2186 = vmatpush1.xpose.msra.mxu0 0.0
        %2187 = vmatprep.subr.mxu0 0.0
        %2188 = vmatpush1.xpose.msra.mxu0 0.0
        %2189 = vmatprep.subr.mxu0 0.0
        %2190 = vmatpush1.xpose.msra.mxu0 0.0
        %2191 = vmatprep.subr.mxu0 0.0
        %2192 = vmatpush1.xpose.msra.mxu0 0.0
        %2193 = vmatprep.subr.mxu0 0.0
        %2194 = vmatpush1.xpose.msra.mxu0 0.0
        %2195 = vmatprep.subr.mxu0 0.0
        %2196 = vmatpush1.xpose.msra.mxu0 0.0
        %2197 = vmatprep.subr.mxu0 0.0
        %2198 = vmatpush1.xpose.msra.mxu0 0.0
        %2199 = vmatprep.subr.mxu0 0.0
        %2200 = vmatpush1.xpose.msra.mxu0 0.0
        %2201 = vmatprep.subr.mxu0 0.0
        %2202 = vmatpush1.xpose.msra.mxu0 0.0
        %2203 = vmatprep.subr.mxu0 0.0
        %2204 = vmatpush1.xpose.msra.mxu0 0.0
        %2205 = vmatprep.subr.mxu0 0.0
        %2206 = vmatpush1.xpose.msra.mxu0 0.0
        %2207 = vmatprep.subr.mxu0 0.0
        %2208 = vmatpush1.xpose.msra.mxu0 0.0
        %2209 = vmatprep.subr.mxu0 0.0
        %2210 = vmatpush1.xpose.msra.mxu0 0.0
        %2211 = vmatprep.subr.mxu0 0.0
        %2212 = vmatpush1.xpose.msra.mxu0 0.0
        %2213 = vmatprep.subr.mxu0 0.0
        %2214 = vmatpush1.xpose.msra.mxu0 0.0
        %2215 = vmatprep.subr.mxu0 0.0
        %2216 = vmatpush1.xpose.msra.mxu0 0.0
        %2217 = vmatprep.subr.mxu0 0.0
        %2218 = vmatpush1.xpose.msra.mxu0 0.0
        %2219 = vmatprep.mubr.f32.mxu0 0.0
        %2220 = vmatmul.mubr.f32.gmra.mrb[0].mxu0 %v2142
        %v2221 = vpop.f32.mrb[0].mxu0
        %v2222 = vadd.f32 0.0, %v2221
        %v2223 = vpop.f32.mrb[0].mxu0
        %2224 = vmatprep.mubr.f32.mxu0 0.0
        %2225 = vmatmul.mubr.f32.gmra.mrb[0].mxu0 %v2145
        %v2226 = vpop.f32.mrb[0].mxu0
        %v2227 = vadd.f32 0.0, %v2226
        %v2228 = vpop.f32.mrb[0].mxu0
        %2229 = vdwg.mxu0
        %v2230 = vadd.f32 %v1929, %v2222
        %v2231 = vadd.f32 %v1930, %v2227
        %v2232 = vadd.f32 %v724, %v2230
        %v2233 = vadd.f32 %v725, %v2231
        %v2234 = vld [vmem:[%s15] sm:$0x1]
        %v2236 = vlaneseq
        %v2237 = vshrl.u32 %v2236, 7
        %v2238 = vsub.s32 0, %v2237
        %v2239 = vrot.slane %v2234, %v2238
        %v2241 = vsub.f32 %v2232, %v2239
        %v2242 = vsub.f32 %v2233, %v2239
        %v2243 = vld [vmem:[%s16] sm:$0x1]
        %v2244 = vadd.f32 %v2243, 1e-05
        %v2245 = vrsqrt.pop %v2244
        %v2246 = vld [vmem:[%s13] sm:$0x1]
        %v2247 = vmul.f32 %v2245, %v2246
        %v2249 = vlaneseq
        %v2250 = vshrl.u32 %v2249, 7
        %v2251 = vsub.s32 0, %v2250
        %v2252 = vrot.slane %v2247, %v2251
        %v2254 = vmul.f32 %v2241, %v2252
        %v2255 = vmul.f32 %v2242, %v2252
        %v2256 = vld [vmem:[%s14] sm:$0x1]
        %v2258 = vlaneseq
        %v2259 = vshrl.u32 %v2258, 7
        %v2260 = vsub.s32 0, %v2259
        %v2261 = vrot.slane %v2256, %v2260
        %v2263 = vadd.f32 %v2254, %v2261
        %v2264 = vadd.f32 %v2255, %v2261
        %v2265 = vld [vmem:[%s9] sm:$0xff]
        %v2266 = vld [vmem:[%s9 + $0x8] sm:$0xff]
        %v2267 = vld [vmem:[%s9 + $0x10] sm:$0xff]
        %v2268 = vld [vmem:[%s9 + $0x18] sm:$0xff]
        %v2269 = vld [vmem:[%s9 + $0x20] sm:$0xff]
        %v2270 = vld [vmem:[%s9 + $0x28] sm:$0xff]
        %v2271 = vld [vmem:[%s9 + $0x30] sm:$0xff]
        %v2272 = vld [vmem:[%s9 + $0x38] sm:$0xff]
        %v2273 = vld [vmem:[%s10] sm:$0x1]
        %v2275 = vlaneseq
        %v2276 = vshrl.u32 %v2275, 7
        %v2277 = vsub.s32 0, %v2276
        %v2278 = vrot.slane %v2273, %v2277
        %v2281 = vsel %vm737, %v2263, 0
        %v2284 = vsel %vm737, %v2264, 0
        %v2287 = vsel %vm737, %v2265, 0
        %v2290 = vsel %vm737, %v2266, 0
        %v2293 = vsel %vm737, %v2267, 0
        %v2296 = vsel %vm737, %v2268, 0
        %v2299 = vsel %vm737, %v2269, 0
        %v2302 = vsel %vm737, %v2270, 0
        %v2305 = vsel %vm737, %v2271, 0
        %v2308 = vsel %vm737, %v2272, 0
        %2310 = vmatprep.subr.mxu0 0.0
        %2311 = vmatpush1.xpose.msra.mxu0 %v2287
        %2312 = vmatprep.subr.mxu0 0.0
        %2313 = vmatpush1.xpose.msra.mxu0 %v2290
        %2314 = vmatprep.subr.mxu0 0.0
        %2315 = vmatpush1.xpose.msra.mxu0 %v2293
        %2316 = vmatprep.subr.mxu0 0.0
        %2317 = vmatpush1.xpose.msra.mxu0 %v2296
        %2318 = vmatprep.subr.mxu0 0.0
        %2319 = vmatpush1.xpose.msra.mxu0 %v2299
        %2320 = vmatprep.subr.mxu0 0.0
        %2321 = vmatpush1.xpose.msra.mxu0 %v2302
        %2322 = vmatprep.subr.mxu0 0.0
        %2323 = vmatpush1.xpose.msra.mxu0 %v2305
        %2324 = vmatprep.subr.mxu0 0.0
        %2325 = vmatpush1.xpose.msra.mxu0 %v2308
        %2326 = vmatprep.subr.mxu0 0.0
        %2327 = vmatpush1.xpose.msra.mxu0 0.0
        %2328 = vmatprep.subr.mxu0 0.0
        %2329 = vmatpush1.xpose.msra.mxu0 0.0
        %2330 = vmatprep.subr.mxu0 0.0
        %2331 = vmatpush1.xpose.msra.mxu0 0.0
        %2332 = vmatprep.subr.mxu0 0.0
        %2333 = vmatpush1.xpose.msra.mxu0 0.0
        %2334 = vmatprep.subr.mxu0 0.0
        %2335 = vmatpush1.xpose.msra.mxu0 0.0
        %2336 = vmatprep.subr.mxu0 0.0
        %2337 = vmatpush1.xpose.msra.mxu0 0.0
        %2338 = vmatprep.subr.mxu0 0.0
        %2339 = vmatpush1.xpose.msra.mxu0 0.0
        %2340 = vmatprep.subr.mxu0 0.0
        %2341 = vmatpush1.xpose.msra.mxu0 0.0
        %2342 = vmatprep.subr.mxu0 0.0
        %2343 = vmatpush1.xpose.msra.mxu0 0.0
        %2344 = vmatprep.subr.mxu0 0.0
        %2345 = vmatpush1.xpose.msra.mxu0 0.0
        %2346 = vmatprep.subr.mxu0 0.0
        %2347 = vmatpush1.xpose.msra.mxu0 0.0
        %2348 = vmatprep.subr.mxu0 0.0
        %2349 = vmatpush1.xpose.msra.mxu0 0.0
        %2350 = vmatprep.subr.mxu0 0.0
        %2351 = vmatpush1.xpose.msra.mxu0 0.0
        %2352 = vmatprep.subr.mxu0 0.0
        %2353 = vmatpush1.xpose.msra.mxu0 0.0
        %2354 = vmatprep.subr.mxu0 0.0
        %2355 = vmatpush1.xpose.msra.mxu0 0.0
        %2356 = vmatprep.subr.mxu0 0.0
        %2357 = vmatpush1.xpose.msra.mxu0 0.0
        %2358 = vmatprep.subr.mxu0 0.0
        %2359 = vmatpush1.xpose.msra.mxu0 0.0
        %2360 = vmatprep.subr.mxu0 0.0
        %2361 = vmatpush1.xpose.msra.mxu0 0.0
        %2362 = vmatprep.subr.mxu0 0.0
        %2363 = vmatpush1.xpose.msra.mxu0 0.0
        %2364 = vmatprep.subr.mxu0 0.0
        %2365 = vmatpush1.xpose.msra.mxu0 0.0
        %2366 = vmatprep.subr.mxu0 0.0
        %2367 = vmatpush1.xpose.msra.mxu0 0.0
        %2368 = vmatprep.subr.mxu0 0.0
        %2369 = vmatpush1.xpose.msra.mxu0 0.0
        %2370 = vmatprep.subr.mxu0 0.0
        %2371 = vmatpush1.xpose.msra.mxu0 0.0
        %2372 = vmatprep.subr.mxu0 0.0
        %2373 = vmatpush1.xpose.msra.mxu0 0.0
        %2374 = vmatprep.mubr.f32.mxu0 0.0
        %2375 = vmatmul.mubr.f32.gmra.mrb[0].mxu0 %v2281
        %v2376 = vpop.f32.mrb[0].mxu0
        %v2377 = vadd.f32 %v2278, %v2376
        %v2378 = vpop.f32.mrb[0].mxu0
        %2379 = vmatprep.mubr.f32.mxu0 0.0
        %2380 = vmatmul.mubr.f32.gmra.mrb[0].mxu0 %v2284
        %v2381 = vpop.f32.mrb[0].mxu0
        %v2382 = vadd.f32 %v2278, %v2381
        %v2383 = vpop.f32.mrb[0].mxu0
        %2384 = vdwg.mxu0
        %v2385 = vmul.f32 %v2377, %v2377
        %v2386 = vmul.f32 %v2382, %v2382
        %v2387 = vmul.f32 %v2377, %v2385
        %v2388 = vmul.f32 %v2382, %v2386
        %v2389 = vmul.f32 %v2387, 0.044715
        %v2390 = vmul.f32 %v2388, 0.044715
        %v2391 = vadd.f32 %v2377, %v2389
        %v2392 = vadd.f32 %v2382, %v2390
        %v2393 = vmul.f32 %v2391, 0.7978846
        %v2394 = vmul.f32 %v2392, 0.7978846
        %v2395 = vtanh.pop %v2393
        %v2396 = vtanh.pop %v2394
        %v2397 = vadd.f32 %v2395, 1.0
        %v2398 = vadd.f32 %v2396, 1.0
        %v2399 = vmul.f32 %v2397, 0.5
        %v2400 = vmul.f32 %v2398, 0.5
        %v2401 = vmul.f32 %v2377, %v2399
        %v2402 = vmul.f32 %v2382, %v2400
        %v2403 = vld [vmem:[#allocation10] sm:$0xff]
        %v2404 = vld [vmem:[#allocation10 + $0x8] sm:$0xff]
        %v2405 = vld [vmem:[#allocation10 + $0x10] sm:$0xff]
        %v2406 = vld [vmem:[#allocation10 + $0x18] sm:$0xff]
        %v2407 = vld [vmem:[%s12] sm:$0x1]
        %v2409 = vlaneseq
        %v2410 = vshrl.u32 %v2409, 7
        %v2411 = vsub.s32 0, %v2410
        %v2412 = vrot.slane %v2407, %v2411
        %vm2414 = vcmask 523264
        %v2416 = vsel %vm2414, %v2401, 0
        %v2419 = vsel %vm2414, %v2402, 0
        %v2422 = vsel %vm2414, %v2403, 0
        %v2425 = vsel %vm2414, %v2404, 0
        %v2428 = vsel %vm2414, %v2405, 0
        %v2431 = vsel %vm2414, %v2406, 0
        %2433 = vmatprep.subr.mxu0 0.0
        %2434 = vmatpush1.xpose.msra.mxu0 %v2422
        %2435 = vmatprep.subr.mxu0 0.0
        %2436 = vmatpush1.xpose.msra.mxu0 %v2425
        %2437 = vmatprep.subr.mxu0 0.0
        %2438 = vmatpush1.xpose.msra.mxu0 %v2428
        %2439 = vmatprep.subr.mxu0 0.0
        %2440 = vmatpush1.xpose.msra.mxu0 %v2431
        %2441 = vmatprep.subr.mxu0 0.0
        %2442 = vmatpush1.xpose.msra.mxu0 0.0
        %2443 = vmatprep.subr.mxu0 0.0
        %2444 = vmatpush1.xpose.msra.mxu0 0.0
        %2445 = vmatprep.subr.mxu0 0.0
        %2446 = vmatpush1.xpose.msra.mxu0 0.0
        %2447 = vmatprep.subr.mxu0 0.0
        %2448 = vmatpush1.xpose.msra.mxu0 0.0
        %2449 = vmatprep.subr.mxu0 0.0
        %2450 = vmatpush1.xpose.msra.mxu0 0.0
        %2451 = vmatprep.subr.mxu0 0.0
        %2452 = vmatpush1.xpose.msra.mxu0 0.0
        %2453 = vmatprep.subr.mxu0 0.0
        %2454 = vmatpush1.xpose.msra.mxu0 0.0
        %2455 = vmatprep.subr.mxu0 0.0
        %2456 = vmatpush1.xpose.msra.mxu0 0.0
        %2457 = vmatprep.subr.mxu0 0.0
        %2458 = vmatpush1.xpose.msra.mxu0 0.0
        %2459 = vmatprep.subr.mxu0 0.0
        %2460 = vmatpush1.xpose.msra.mxu0 0.0
        %2461 = vmatprep.subr.mxu0 0.0
        %2462 = vmatpush1.xpose.msra.mxu0 0.0
        %2463 = vmatprep.subr.mxu0 0.0
        %2464 = vmatpush1.xpose.msra.mxu0 0.0
        %2465 = vmatprep.subr.mxu0 0.0
        %2466 = vmatpush1.xpose.msra.mxu0 0.0
        %2467 = vmatprep.subr.mxu0 0.0
        %2468 = vmatpush1.xpose.msra.mxu0 0.0
        %2469 = vmatprep.subr.mxu0 0.0
        %2470 = vmatpush1.xpose.msra.mxu0 0.0
        %2471 = vmatprep.subr.mxu0 0.0
        %2472 = vmatpush1.xpose.msra.mxu0 0.0
        %2473 = vmatprep.subr.mxu0 0.0
        %2474 = vmatpush1.xpose.msra.mxu0 0.0
        %2475 = vmatprep.subr.mxu0 0.0
        %2476 = vmatpush1.xpose.msra.mxu0 0.0
        %2477 = vmatprep.subr.mxu0 0.0
        %2478 = vmatpush1.xpose.msra.mxu0 0.0
        %2479 = vmatprep.subr.mxu0 0.0
        %2480 = vmatpush1.xpose.msra.mxu0 0.0
        %2481 = vmatprep.subr.mxu0 0.0
        %2482 = vmatpush1.xpose.msra.mxu0 0.0
        %2483 = vmatprep.subr.mxu0 0.0
        %2484 = vmatpush1.xpose.msra.mxu0 0.0
        %2485 = vmatprep.subr.mxu0 0.0
        %2486 = vmatpush1.xpose.msra.mxu0 0.0
        %2487 = vmatprep.subr.mxu0 0.0
        %2488 = vmatpush1.xpose.msra.mxu0 0.0
        %2489 = vmatprep.subr.mxu0 0.0
        %2490 = vmatpush1.xpose.msra.mxu0 0.0
        %2491 = vmatprep.subr.mxu0 0.0
        %2492 = vmatpush1.xpose.msra.mxu0 0.0
        %2493 = vmatprep.subr.mxu0 0.0
        %2494 = vmatpush1.xpose.msra.mxu0 0.0
        %2495 = vmatprep.subr.mxu0 0.0
        %2496 = vmatpush1.xpose.msra.mxu0 0.0
        %2497 = vmatprep.mubr.f32.mxu0 0.0
        %2498 = vmatmul.mubr.f32.gmra.mrb[0].mxu0 %v2416
        %v2499 = vpop.f32.mrb[0].mxu0
        %v2500 = vadd.f32 %v2412, %v2499
        %v2501 = vpop.f32.mrb[0].mxu0
        %2502 = vmatprep.mubr.f32.mxu0 0.0
        %2503 = vmatmul.mubr.f32.gmra.mrb[0].mxu0 %v2419
        %v2504 = vpop.f32.mrb[0].mxu0
        %v2505 = vadd.f32 %v2412, %v2504
        %v2506 = vpop.f32.mrb[0].mxu0
        %2507 = vdwg.mxu0
        %v2508 = vadd.f32 %v2263, %v2500
        %v2509 = vadd.f32 %v2264, %v2505
        %v2510 = vld [vmem:[%s19] sm:$0x1]
        %v2512 = vlaneseq
        %v2513 = vshrl.u32 %v2512, 7
        %v2514 = vsub.s32 0, %v2513
        %v2515 = vrot.slane %v2510, %v2514
        %v2517 = vsub.f32 %v2508, %v2515
        %v2518 = vsub.f32 %v2509, %v2515
        %v2519 = vld [vmem:[%s20] sm:$0x1]
        %v2520 = vadd.f32 %v2519, 1e-05
        %v2521 = vrsqrt.pop %v2520
        %v2522 = vld [vmem:[%s17] sm:$0x1]
        %v2523 = vmul.f32 %v2521, %v2522
        %v2525 = vlaneseq
        %v2526 = vshrl.u32 %v2525, 7
        %v2527 = vsub.s32 0, %v2526
        %v2528 = vrot.slane %v2523, %v2527
        %v2530 = vmul.f32 %v2517, %v2528
        %v2531 = vmul.f32 %v2518, %v2528
        %v2532 = vld [vmem:[%s18] sm:$0x1]
        %v2534 = vlaneseq
        %v2535 = vshrl.u32 %v2534, 7
        %v2536 = vsub.s32 0, %v2535
        %v2537 = vrot.slane %v2532, %v2536
        %v2539 = vadd.f32 %v2530, %v2537
        %v2540 = vadd.f32 %v2531, %v2537
        %2541 = vst.msk [vmem:[%s718] sm:$0xff] %vm737, %v2539
        %2542 = vst.msk [vmem:[%s718 + $0x8] sm:$0xff] %vm737, %v2540
        %s2543 = sand.u32 %s492, 1
        %s2544 = scalar_lea.sflag [#allocation4], %s2543
        %s2545 = sand.u32 %s492, 1
        %s2546 = smul.addr %s2545, 16
        %s2547 = scalar_lea.vmem [#allocation11], %s2546
        // Predicated region
        $region125: #{tpu_custom_call.1} parent=103 // pred_check
          %p2548 = pneg %p502
        $region126: #{tpu_custom_call.1} parent=103 // pred_check_branch
          %2550 = sbr.rel (%p2548) target = $region128
        $region127: #{tpu_custom_call.1} parent=103 // pred_region
          %s2552 = ssub.s32 256, 256
          %2553 = vsyncadd %s2544, %s2552
          %s2554 = smul.addr %s38, 2
          %s2555 = smul.addr %s2554, 128
          %s2556 = scalar_lea.hbm %s21, %s2555
          %s2557 = sshll.u32 %s2547, 4
          %s2558 = int_to_ptr.vmem [resolvable:$true] %s2557
          %2563 = dma.vmem_to_hbm [thread:$0]  %s2558, 256, %s2556, %s2544, 128, 128, 8
        $region128: #{tpu_custom_call.1} parent=103 // pred_fallthru
          _
      $region104: #{tpu_custom_call.1} parent=5 // pred_fallthru
        _
      %p2564 = scmp.le.s32.totalorder 2, %s33
      // Predicated region
      $region129: #{tpu_custom_call.1} parent=5 // pred_check
        %p2565 = pneg %p2564
      $region130: #{tpu_custom_call.1} parent=5 // pred_check_branch
        %2567 = sbr.rel (%p2565) target = $region132
      $region131: #{tpu_custom_call.1} parent=5 // pred_region
        %s2568 = ssub.s32 %s33, 2
        // Predicated region
        $region133: #{tpu_custom_call.1} parent=131 // pred_check
          %p2569 = pneg %p508
        $region134: #{tpu_custom_call.1} parent=131 // pred_check_branch
          %2571 = sbr.rel (%p2569) target = $region136
        $region135: #{tpu_custom_call.1} parent=131 // pred_region
          %s2572 = sand.u32 %s493, 1
          %s2573 = scalar_lea.sflag [#allocation4], %s2572
          %s2574 = sand.u32 %s493, 1
          %s2575 = smul.addr %s2574, 16
          %s2576 = scalar_lea.vmem [#allocation11], %s2575
          %2577 = dma.done %s2573, 256
        $region136: #{tpu_custom_call.1} parent=131 // pred_fallthru
          _
      $region132: #{tpu_custom_call.1} parent=5 // pred_fallthru
        _
    $region6: #{tpu_custom_call.1} parent=1 // loop_footer
      %s37 = sadd.s32 1, %s33
    $region7: #{tpu_custom_call.1} parent=1 // loop_footer_branch
      %32 = sbr.rel target = $region3
    $region8: #{tpu_custom_call.1} parent=1 // loop_exit
      _
    %2578 = vsyncpa [#allocation3], 1
    %s2579 = scalar_lea.sflag [#allocation3], 1
    %2580 = vsyncpa %s2579, 1
    %2581 = vsyncpa [#allocation6], 1
    %2582 = vsyncpa [#allocation9], 1
    %2583 = vsyncpa [#allocation4], 1
    %s2584 = scalar_lea.sflag [#allocation4], 1
    %2585 = vsyncpa %s2584, 1

</llo_original>
